<compile_context>
chip_gen: v5e
topology: v5e:2x2
jax: 0.10.0
libtpu: 0.0.40
codegen_flags: <defaults>
</compile_context>

<pallas_src>
import numpy as np
import jax
import jax.numpy as jnp
from jax.experimental import pallas as pl
from jax.experimental.pallas import tpu as pltpu


# ----------------------------------------------------------------------------
# Pallas kernels
# ----------------------------------------------------------------------------
def _conv_matmul_kernel(x_ref, w_ref, b_ref, o_ref):
    # bf16 x bf16 -> f32 accumulate on the MXU; epilogue in f32.
    acc = jnp.dot(x_ref[...], w_ref[...], preferred_element_type=jnp.float32)
    acc = acc + b_ref[...]
    o_ref[...] = jnp.where(acc >= 0.0, acc, 0.2 * acc)


def matmul_bias_lrelu(patches, w_mat, b_row, *, tm=256):
    """Tiled (M, K) @ (K, N) + bias + LeakyReLU(0.2).

    patches: (M, K) bf16, w_mat: (K, N) bf16, b_row: (1, N) f32 -> (M, N) f32.
    Grid tiles M; weights/bias use a constant block index (VMEM resident).
    """
    M, K = patches.shape
    _, N = w_mat.shape
    tm = min(tm, M)
    grid = (pl.cdiv(M, tm),)
    return pl.pallas_call(
        _conv_matmul_kernel,
        out_shape=jax.ShapeDtypeStruct((M, N), jnp.float32),
        grid=grid,
        in_specs=[
            pl.BlockSpec((tm, K), lambda i: (i, 0)),
            pl.BlockSpec((K, N), lambda i: (0, 0)),
            pl.BlockSpec((1, N), lambda i: (0, 0)),
        ],
        out_specs=pl.BlockSpec((tm, N), lambda i: (i, 0)),
        compiler_params=pltpu.CompilerParams(
            dimension_semantics=("parallel",),
            vmem_limit_bytes=32 * 1024 * 1024,
        ),
    )(patches, w_mat, b_row)


def _conv4_head_kernel(x_ref, w4_ref, b4_ref, w1_ref, b1_ref, embw2_ref,
                       b2_ref, o_ref):
    # conv4 as (B, 1024) @ (1024, 128) + bias, LeakyReLU(0.2).
    h = jnp.dot(x_ref[...], w4_ref[...],
                preferred_element_type=jnp.float32) + b4_ref[...]
    h = jnp.where(h >= 0.0, h, 0.2 * h)
    # Linear(128 -> 64).
    feats = jnp.dot(h, w1_ref[...],
                    preferred_element_type=jnp.float32) + b1_ref[...]
    # Fused: inner_prod + unconditioned = sum(feats * (emb + w2^T)) + b2.
    o_ref[...] = jnp.sum(feats * embw2_ref[...], axis=1,
                         keepdims=True) + b2_ref[...]


def conv4_head(flat4, w4, b4, w1, b1, emb_plus_w2, b2, *, tb=256):
    """Fused conv4 (1x1 output) + fc + class inner-product + unconditioned."""
    B, K = flat4.shape
    N4 = w4.shape[1]
    E = w1.shape[1]
    tb = min(tb, B)
    grid = (pl.cdiv(B, tb),)
    return pl.pallas_call(
        _conv4_head_kernel,
        out_shape=jax.ShapeDtypeStruct((B, 1), jnp.float32),
        grid=grid,
        in_specs=[
            pl.BlockSpec((tb, K), lambda i: (i, 0)),
            pl.BlockSpec((K, N4), lambda i: (0, 0)),
            pl.BlockSpec((1, N4), lambda i: (0, 0)),
            pl.BlockSpec((N4, E), lambda i: (0, 0)),
            pl.BlockSpec((1, E), lambda i: (0, 0)),
            pl.BlockSpec((tb, E), lambda i: (i, 0)),
            pl.BlockSpec((1, 1), lambda i: (0, 0)),
        ],
        out_specs=pl.BlockSpec((tb, 1), lambda i: (i, 0)),
        compiler_params=pltpu.CompilerParams(
            dimension_semantics=("parallel",),
            vmem_limit_bytes=32 * 1024 * 1024,
        ),
    )(flat4, w4, b4, w1, b1, emb_plus_w2, b2)


# ----------------------------------------------------------------------------
# Glue: NHWC im2col, spectral norm, parameter setup, full forward
# ----------------------------------------------------------------------------
def im2col_nhwc(x, k, stride, pad):
    """x: (B, H, W, C) NHWC -> (B*Ho*Wo, k*k*C); patch row layout (kh, kw, c)
    matches conv weights reshaped via OIHW.transpose(2, 3, 1, 0)."""
    B, H, W, C = x.shape
    xp = jnp.pad(x, ((0, 0), (pad, pad), (pad, pad), (0, 0)))
    Ho = (H + 2 * pad - k) // stride + 1
    Wo = (W + 2 * pad - k) // stride + 1
    cols = []
    for i in range(k):
        for j in range(k):
            cols.append(xp[:, i:i + stride * Ho:stride,
                           j:j + stride * Wo:stride, :])
    p = jnp.stack(cols, axis=3)                  # (B, Ho, Wo, k*k, C)
    p = p.reshape(B * Ho * Wo, k * k * C)
    return p, Ho, Wo


def conv_w_to_mat(w):
    """OIHW (Cout, Cin, kh, kw) -> (kh*kw*Cin, Cout) to match im2col_nhwc."""
    Cout, Cin, kh, kw = w.shape
    return jnp.transpose(w, (2, 3, 1, 0)).reshape(kh * kw * Cin, Cout)


def spectral_normalize(w2d):
    # TODO(synk): torch spectral_norm uses a running 1-step power iteration; we
    # use the exact largest singular value (its fixed point) on synthetic weights.
    sigma = jnp.linalg.svd(w2d, compute_uv=False)[0]
    return w2d / sigma


def make_params(key):
    ks = jax.random.split(key, 10)
    n_classes, embedding_dim = 43, 64

    def rnd(k, shape, scale=0.05):
        return (scale * jax.random.normal(k, shape)).astype(jnp.float32)

    def sn_conv(w):
        return spectral_normalize(w.reshape(w.shape[0], -1)).reshape(w.shape)

    conv1_w = sn_conv(rnd(ks[0], (16, 3, 4, 4)))
    conv2_w = sn_conv(rnd(ks[1], (32, 16, 4, 4)))
    conv3_w = sn_conv(rnd(ks[2], (64, 32, 4, 4)))
    conv4_w = sn_conv(rnd(ks[3], (128, 64, 4, 4)))
    conv4_b = rnd(ks[4], (128,), 0.02)

    # Linear(128 -> 64): stored transposed as (128, 64) for x @ W.
    fc_w = spectral_normalize(rnd(ks[5], (128, embedding_dim)))
    fc_b = rnd(ks[6], (embedding_dim,), 0.02)

    emb_w = spectral_normalize(rnd(ks[7], (n_classes, embedding_dim), 0.5))

    # Linear(64 -> 1): stored transposed as (64, 1).
    uncond_w = spectral_normalize(rnd(ks[8], (embedding_dim, 1)))
    uncond_b = rnd(ks[9], (1,), 0.02)

    # Kernel-path conv1..3: bf16 (K, Cout) matrices, zero f32 bias rows.
    convs = []
    for w in (conv1_w, conv2_w, conv3_w):
        m = conv_w_to_mat(w).astype(jnp.bfloat16)
        convs.append((m, jnp.zeros((1, m.shape[1]), jnp.float32), 4, 2, 1))

    return {
        # Pallas path.
        "convs": convs,                                 # (w_mat, b_row, k, s, p)
        "conv4_mat": conv_w_to_mat(conv4_w),            # (1024, 128) f32
        "conv4_b": conv4_b,
        "fc_w": fc_w, "fc_b": fc_b,
        "emb_w": emb_w,
        "uncond_w": uncond_w, "uncond_b": uncond_b,
        # Reference path (original OIHW weights).
        "ref_convs": [
            (conv1_w, None, 2, 1),
            (conv2_w, None, 2, 1),
            (conv3_w, None, 2, 1),
            (conv4_w, conv4_b, 1, 0),
        ],
    }


def discriminator_forward(params, x, y):
    B = x.shape[0]
    h = jnp.transpose(x, (0, 2, 3, 1))                  # NCHW -> NHWC (once)
    for (w_mat, b_row, k, stride, pad) in params["convs"]:
        patches, Ho, Wo = im2col_nhwc(h, k, stride, pad)
        out = matmul_bias_lrelu(patches.astype(jnp.bfloat16), w_mat, b_row)
        h = out.reshape(B, Ho, Wo, w_mat.shape[1])      # stays NHWC, no transpose

    # conv4 has a 1x1 spatial output, so its im2col is just the NHWC flatten;
    # the (h, w, c) flatten order matches conv4_mat's row layout.
    flat4 = h.reshape(B, -1)                            # (B, 1024)
    emb = params["emb_w"][y]                            # (B, 64) gather (glue)
    emb_plus_w2 = emb + params["uncond_w"].reshape(1, -1)

    return conv4_head(
        flat4,
        params["conv4_mat"], params["conv4_b"].reshape(1, -1),
        params["fc_w"], params["fc_b"].reshape(1, -1),
        emb_plus_w2,
        params["uncond_b"].reshape(1, 1),
    )                                                   # (B, 1)


# Pure-JAX reference (NCHW, highest precision) for a correctness sanity check.
def reference_forward(params, x, y):
    h = x
    for (w, b, stride, pad) in params["ref_convs"]:
        h = jax.lax.conv_general_dilated(
            h, w, (stride, stride), [(pad, pad), (pad, pad)],
            dimension_numbers=("NCHW", "OIHW", "NCHW"),
            precision=jax.lax.Precision.HIGHEST)
        if b is not None:
            h = h + b[None, :, None, None]
        h = jnp.where(h >= 0.0, h, 0.2 * h)
    flat = h.reshape(h.shape[0], -1)
    feats = jnp.dot(flat, params["fc_w"],
                    precision=jax.lax.Precision.HIGHEST) + params["fc_b"]
    emb = params["emb_w"][y]
    inner = jnp.sum(feats * emb, axis=1, keepdims=True)
    uncond = jnp.dot(feats, params["uncond_w"],
                     precision=jax.lax.Precision.HIGHEST) + params["uncond_b"]
    return uncond + inner


if __name__ == "__main__":
    key = jax.random.PRNGKey(0)
    pkey, xkey = jax.random.split(key)
    params = make_params(pkey)

    # 3x32x32 images collapse to 1x1 after the four convs (32->16->8->4->1),
    # batch = 2, labels in [0, 43).
    x = jax.random.normal(xkey, (2, 3, 32, 32), dtype=jnp.float32)
    y = jnp.array([3, 17], dtype=jnp.int32)

    fwd = jax.jit(lambda xx, yy: discriminator_forward(params, xx, yy))
    out = jax.block_until_ready(fwd(x, y))
    assert out.shape == (2, 1)

    ref = jax.block_until_ready(reference_forward(params, x, y))
    np.testing.assert_allclose(np.asarray(out), np.asarray(ref),
                               rtol=1e-2, atol=1e-2)

    print("KERNEL_OK")
</pallas_src>

<mosaic_0001>
module attributes {stable_mosaic.version = 11 : i64} {
  func.func @_conv_matmul_kernel(%arg0: i32, %arg1: memref<256x48xbf16, #tpu.memory_space<vmem>>, %arg2: memref<48x16xbf16, #tpu.memory_space<vmem>>, %arg3: memref<1x16xf32, #tpu.memory_space<vmem>>, %arg4: memref<256x16xf32, #tpu.memory_space<vmem>>) attributes {dimension_semantics = [#tpu.dimension_semantics<parallel>], iteration_bounds = array<i64: 2>, scalar_prefetch = 0 : i64, scratch_operands = 0 : i64, tpu.core_type = #tpu.core_type<tc>, window_params = [{transform_indices = @transform_0, window_bounds = array<i64: 256, 48>}, {pipeline_mode = #tpu.pipeline_mode<synchronous>, transform_indices = @transform_1, window_bounds = array<i64: 48, 16>}, {pipeline_mode = #tpu.pipeline_mode<synchronous>, transform_indices = @transform_2, window_bounds = array<i64: 1, 16>}, {transform_indices = @transform_3, window_bounds = array<i64: 256, 16>}]} {
    %c0 = arith.constant 0 : index
    %c0_0 = arith.constant 0 : index
    %0 = vector.load %arg1[%c0, %c0_0] : memref<256x48xbf16, #tpu.memory_space<vmem>>, vector<256x48xbf16>
    %c0_1 = arith.constant 0 : index
    %c0_2 = arith.constant 0 : index
    %1 = vector.load %arg2[%c0_1, %c0_2] : memref<48x16xbf16, #tpu.memory_space<vmem>>, vector<48x16xbf16>
    %cst = arith.constant dense<0.000000e+00> : vector<256x16xf32>
    %2 = tpu.matmul %0, %1, %cst {dimension_numbers = #tpu.dot_dimension_numbers<[1], [0], [0], [1], [0, 0, 1, 1], [], []>} : vector<256x48xbf16>, vector<48x16xbf16>, vector<256x16xf32> -> vector<256x16xf32>
    %c0_3 = arith.constant 0 : index
    %c0_4 = arith.constant 0 : index
    %3 = vector.load %arg3[%c0_3, %c0_4] : memref<1x16xf32, #tpu.memory_space<vmem>>, vector<1x16xf32>
    %4 = vector.broadcast %3 : vector<1x16xf32> to vector<256x16xf32>
    %5 = arith.addf %2, %4 : vector<256x16xf32>
    %cst_5 = arith.constant 0.000000e+00 : f32
    %6 = vector.broadcast %cst_5 : f32 to vector<256x16xf32>
    %7 = arith.cmpf oge, %5, %6 : vector<256x16xf32>
    %cst_6 = arith.constant 2.000000e-01 : f32
    %8 = vector.broadcast %cst_6 : f32 to vector<256x16xf32>
    %9 = arith.mulf %8, %5 : vector<256x16xf32>
    %10 = arith.select %7, %5, %9 : vector<256x16xi1>, vector<256x16xf32>
    %c0_7 = arith.constant 0 : index
    %c0_8 = arith.constant 0 : index
    %11 = vector.load %arg4[%c0_7, %c0_8] : memref<256x16xf32, #tpu.memory_space<vmem>>, vector<256x16xf32>
    tpu.vector_store %arg4[%c0_7, %c0_8], %10 {strides = array<i32>} : memref<256x16xf32, #tpu.memory_space<vmem>>, vector<256x16xf32>,
    return
  }
  func.func @transform_0(%arg0: i32) -> (i32, i32) {
    %c0_i32 = arith.constant 0 : i32
    %c0_i32_0 = arith.constant 0 : i32
    return %arg0, %c0_i32 : i32, i32
  }
  func.func @transform_1(%arg0: i32) -> (i32, i32) {
    %c0_i32 = arith.constant 0 : i32
    %c0_i32_0 = arith.constant 0 : i32
    %c0_i32_1 = arith.constant 0 : i32
    return %c0_i32, %c0_i32_0 : i32, i32
  }
  func.func @transform_2(%arg0: i32) -> (i32, i32) {
    %c0_i32 = arith.constant 0 : i32
    %c0_i32_0 = arith.constant 0 : i32
    %c0_i32_1 = arith.constant 0 : i32
    return %c0_i32, %c0_i32_0 : i32, i32
  }
  func.func @transform_3(%arg0: i32) -> (i32, i32) {
    %c0_i32 = arith.constant 0 : i32
    %c0_i32_0 = arith.constant 0 : i32
    return %arg0, %c0_i32 : i32, i32
  }
}

module attributes {stable_mosaic.version = 11 : i64} {
  func.func @_conv_matmul_kernel(%arg0: i32, %arg1: memref<128x256xbf16, #tpu.memory_space<vmem>>, %arg2: memref<256x32xbf16, #tpu.memory_space<vmem>>, %arg3: memref<1x32xf32, #tpu.memory_space<vmem>>, %arg4: memref<128x32xf32, #tpu.memory_space<vmem>>) attributes {dimension_semantics = [#tpu.dimension_semantics<parallel>], iteration_bounds = array<i64: 1>, scalar_prefetch = 0 : i64, scratch_operands = 0 : i64, tpu.core_type = #tpu.core_type<tc>, window_params = [{transform_indices = @transform_0, window_bounds = array<i64: 128, 256>}, {pipeline_mode = #tpu.pipeline_mode<synchronous>, transform_indices = @transform_1, window_bounds = array<i64: 256, 32>}, {pipeline_mode = #tpu.pipeline_mode<synchronous>, transform_indices = @transform_2, window_bounds = array<i64: 1, 32>}, {transform_indices = @transform_3, window_bounds = array<i64: 128, 32>}]} {
    %c0 = arith.constant 0 : index
    %c0_0 = arith.constant 0 : index
    %0 = vector.load %arg1[%c0, %c0_0] : memref<128x256xbf16, #tpu.memory_space<vmem>>, vector<128x256xbf16>
    %c0_1 = arith.constant 0 : index
    %c0_2 = arith.constant 0 : index
    %1 = vector.load %arg2[%c0_1, %c0_2] : memref<256x32xbf16, #tpu.memory_space<vmem>>, vector<256x32xbf16>
    %cst = arith.constant dense<0.000000e+00> : vector<128x32xf32>
    %2 = tpu.matmul %0, %1, %cst {dimension_numbers = #tpu.dot_dimension_numbers<[1], [0], [0], [1], [0, 0, 1, 1], [], []>} : vector<128x256xbf16>, vector<256x32xbf16>, vector<128x32xf32> -> vector<128x32xf32>
    %c0_3 = arith.constant 0 : index
    %c0_4 = arith.constant 0 : index
    %3 = vector.load %arg3[%c0_3, %c0_4] : memref<1x32xf32, #tpu.memory_space<vmem>>, vector<1x32xf32>
    %4 = vector.broadcast %3 : vector<1x32xf32> to vector<128x32xf32>
    %5 = arith.addf %2, %4 : vector<128x32xf32>
    %cst_5 = arith.constant 0.000000e+00 : f32
    %6 = vector.broadcast %cst_5 : f32 to vector<128x32xf32>
    %7 = arith.cmpf oge, %5, %6 : vector<128x32xf32>
    %cst_6 = arith.constant 2.000000e-01 : f32
    %8 = vector.broadcast %cst_6 : f32 to vector<128x32xf32>
    %9 = arith.mulf %8, %5 : vector<128x32xf32>
    %10 = arith.select %7, %5, %9 : vector<128x32xi1>, vector<128x32xf32>
    %c0_7 = arith.constant 0 : index
    %c0_8 = arith.constant 0 : index
    %11 = vector.load %arg4[%c0_7, %c0_8] : memref<128x32xf32, #tpu.memory_space<vmem>>, vector<128x32xf32>
    tpu.vector_store %arg4[%c0_7, %c0_8], %10 {strides = array<i32>} : memref<128x32xf32, #tpu.memory_space<vmem>>, vector<128x32xf32>,
    return
  }
  func.func @transform_0(%arg0: i32) -> (i32, i32) {
    %c0_i32 = arith.constant 0 : i32
    %c0_i32_0 = arith.constant 0 : i32
    return %arg0, %c0_i32 : i32, i32
  }
  func.func @transform_1(%arg0: i32) -> (i32, i32) {
    %c0_i32 = arith.constant 0 : i32
    %c0_i32_0 = arith.constant 0 : i32
    %c0_i32_1 = arith.constant 0 : i32
    return %c0_i32, %c0_i32_0 : i32, i32
  }
  func.func @transform_2(%arg0: i32) -> (i32, i32) {
    %c0_i32 = arith.constant 0 : i32
    %c0_i32_0 = arith.constant 0 : i32
    %c0_i32_1 = arith.constant 0 : i32
    return %c0_i32, %c0_i32_0 : i32, i32
  }
  func.func @transform_3(%arg0: i32) -> (i32, i32) {
    %c0_i32 = arith.constant 0 : i32
    %c0_i32_0 = arith.constant 0 : i32
    return %arg0, %c0_i32 : i32, i32
  }
}

module attributes {stable_mosaic.version = 11 : i64} {
  func.func @_conv_matmul_kernel(%arg0: i32, %arg1: memref<32x512xbf16, #tpu.memory_space<vmem>>, %arg2: memref<512x64xbf16, #tpu.memory_space<vmem>>, %arg3: memref<1x64xf32, #tpu.memory_space<vmem>>, %arg4: memref<32x64xf32, #tpu.memory_space<vmem>>) attributes {dimension_semantics = [#tpu.dimension_semantics<parallel>], iteration_bounds = array<i64: 1>, scalar_prefetch = 0 : i64, scratch_operands = 0 : i64, tpu.core_type = #tpu.core_type<tc>, window_params = [{transform_indices = @transform_0, window_bounds = array<i64: 32, 512>}, {pipeline_mode = #tpu.pipeline_mode<synchronous>, transform_indices = @transform_1, window_bounds = array<i64: 512, 64>}, {pipeline_mode = #tpu.pipeline_mode<synchronous>, transform_indices = @transform_2, window_bounds = array<i64: 1, 64>}, {transform_indices = @transform_3, window_bounds = array<i64: 32, 64>}]} {
    %c0 = arith.constant 0 : index
    %c0_0 = arith.constant 0 : index
    %0 = vector.load %arg1[%c0, %c0_0] : memref<32x512xbf16, #tpu.memory_space<vmem>>, vector<32x512xbf16>
    %c0_1 = arith.constant 0 : index
    %c0_2 = arith.constant 0 : index
    %1 = vector.load %arg2[%c0_1, %c0_2] : memref<512x64xbf16, #tpu.memory_space<vmem>>, vector<512x64xbf16>
    %cst = arith.constant dense<0.000000e+00> : vector<32x64xf32>
    %2 = tpu.matmul %0, %1, %cst {dimension_numbers = #tpu.dot_dimension_numbers<[1], [0], [0], [1], [0, 0, 1, 1], [], []>} : vector<32x512xbf16>, vector<512x64xbf16>, vector<32x64xf32> -> vector<32x64xf32>
    %c0_3 = arith.constant 0 : index
    %c0_4 = arith.constant 0 : index
    %3 = vector.load %arg3[%c0_3, %c0_4] : memref<1x64xf32, #tpu.memory_space<vmem>>, vector<1x64xf32>
    %4 = vector.broadcast %3 : vector<1x64xf32> to vector<32x64xf32>
    %5 = arith.addf %2, %4 : vector<32x64xf32>
    %cst_5 = arith.constant 0.000000e+00 : f32
    %6 = vector.broadcast %cst_5 : f32 to vector<32x64xf32>
    %7 = arith.cmpf oge, %5, %6 : vector<32x64xf32>
    %cst_6 = arith.constant 2.000000e-01 : f32
    %8 = vector.broadcast %cst_6 : f32 to vector<32x64xf32>
    %9 = arith.mulf %8, %5 : vector<32x64xf32>
    %10 = arith.select %7, %5, %9 : vector<32x64xi1>, vector<32x64xf32>
    %c0_7 = arith.constant 0 : index
    %c0_8 = arith.constant 0 : index
    %11 = vector.load %arg4[%c0_7, %c0_8] : memref<32x64xf32, #tpu.memory_space<vmem>>, vector<32x64xf32>
    tpu.vector_store %arg4[%c0_7, %c0_8], %10 {strides = array<i32>} : memref<32x64xf32, #tpu.memory_space<vmem>>, vector<32x64xf32>,
    return
  }
  func.func @transform_0(%arg0: i32) -> (i32, i32) {
    %c0_i32 = arith.constant 0 : i32
    %c0_i32_0 = arith.constant 0 : i32
    return %arg0, %c0_i32 : i32, i32
  }
  func.func @transform_1(%arg0: i32) -> (i32, i32) {
    %c0_i32 = arith.constant 0 : i32
    %c0_i32_0 = arith.constant 0 : i32
    %c0_i32_1 = arith.constant 0 : i32
    return %c0_i32, %c0_i32_0 : i32, i32
  }
  func.func @transform_2(%arg0: i32) -> (i32, i32) {
    %c0_i32 = arith.constant 0 : i32
    %c0_i32_0 = arith.constant 0 : i32
    %c0_i32_1 = arith.constant 0 : i32
    return %c0_i32, %c0_i32_0 : i32, i32
  }
  func.func @transform_3(%arg0: i32) -> (i32, i32) {
    %c0_i32 = arith.constant 0 : i32
    %c0_i32_0 = arith.constant 0 : i32
    return %arg0, %c0_i32 : i32, i32
  }
}

module attributes {stable_mosaic.version = 11 : i64} {
  func.func @_conv4_head_kernel(%arg0: i32, %arg1: memref<2x1024xf32, #tpu.memory_space<vmem>>, %arg2: memref<1024x128xf32, #tpu.memory_space<vmem>>, %arg3: memref<1x128xf32, #tpu.memory_space<vmem>>, %arg4: memref<128x64xf32, #tpu.memory_space<vmem>>, %arg5: memref<1x64xf32, #tpu.memory_space<vmem>>, %arg6: memref<2x64xf32, #tpu.memory_space<vmem>>, %arg7: memref<1x1xf32, #tpu.memory_space<vmem>>, %arg8: memref<2x1xf32, #tpu.memory_space<vmem>>) attributes {dimension_semantics = [#tpu.dimension_semantics<parallel>], iteration_bounds = array<i64: 1>, scalar_prefetch = 0 : i64, scratch_operands = 0 : i64, tpu.core_type = #tpu.core_type<tc>, window_params = [{transform_indices = @transform_0, window_bounds = array<i64: 2, 1024>}, {pipeline_mode = #tpu.pipeline_mode<synchronous>, transform_indices = @transform_1, window_bounds = array<i64: 1024, 128>}, {pipeline_mode = #tpu.pipeline_mode<synchronous>, transform_indices = @transform_2, window_bounds = array<i64: 1, 128>}, {pipeline_mode = #tpu.pipeline_mode<synchronous>, transform_indices = @transform_3, window_bounds = array<i64: 128, 64>}, {pipeline_mode = #tpu.pipeline_mode<synchronous>, transform_indices = @transform_4, window_bounds = array<i64: 1, 64>}, {transform_indices = @transform_5, window_bounds = array<i64: 2, 64>}, {pipeline_mode = #tpu.pipeline_mode<synchronous>, transform_indices = @transform_6, window_bounds = array<i64: 1, 1>}, {transform_indices = @transform_7, window_bounds = array<i64: 2, 1>}]} {
    %c0 = arith.constant 0 : index
    %c0_0 = arith.constant 0 : index
    %0 = vector.load %arg1[%c0, %c0_0] : memref<2x1024xf32, #tpu.memory_space<vmem>>, vector<2x1024xf32>
    %c0_1 = arith.constant 0 : index
    %c0_2 = arith.constant 0 : index
    %1 = vector.load %arg2[%c0_1, %c0_2] : memref<1024x128xf32, #tpu.memory_space<vmem>>, vector<1024x128xf32>
    %cst = arith.constant dense<0.000000e+00> : vector<2x128xf32>
    %2 = tpu.matmul %0, %1, %cst {dimension_numbers = #tpu.dot_dimension_numbers<[1], [0], [0], [1], [0, 0, 1, 1], [], []>} : vector<2x1024xf32>, vector<1024x128xf32>, vector<2x128xf32> -> vector<2x128xf32>
    %c0_3 = arith.constant 0 : index
    %c0_4 = arith.constant 0 : index
    %3 = vector.load %arg3[%c0_3, %c0_4] : memref<1x128xf32, #tpu.memory_space<vmem>>, vector<1x128xf32>
    %4 = vector.broadcast %3 : vector<1x128xf32> to vector<2x128xf32>
    %5 = arith.addf %2, %4 : vector<2x128xf32>
    %cst_5 = arith.constant 0.000000e+00 : f32
    %6 = vector.broadcast %cst_5 : f32 to vector<2x128xf32>
    %7 = arith.cmpf oge, %5, %6 : vector<2x128xf32>
    %cst_6 = arith.constant 2.000000e-01 : f32
    %8 = vector.broadcast %cst_6 : f32 to vector<2x128xf32>
    %9 = arith.mulf %8, %5 : vector<2x128xf32>
    %10 = arith.select %7, %5, %9 : vector<2x128xi1>, vector<2x128xf32>
    %c0_7 = arith.constant 0 : index
    %c0_8 = arith.constant 0 : index
    %11 = vector.load %arg4[%c0_7, %c0_8] : memref<128x64xf32, #tpu.memory_space<vmem>>, vector<128x64xf32>
    %cst_9 = arith.constant dense<0.000000e+00> : vector<2x64xf32>
    %12 = tpu.matmul %10, %11, %cst_9 {dimension_numbers = #tpu.dot_dimension_numbers<[1], [0], [0], [1], [0, 0, 1, 1], [], []>} : vector<2x128xf32>, vector<128x64xf32>, vector<2x64xf32> -> vector<2x64xf32>
    %c0_10 = arith.constant 0 : index
    %c0_11 = arith.constant 0 : index
    %13 = vector.load %arg5[%c0_10, %c0_11] : memref<1x64xf32, #tpu.memory_space<vmem>>, vector<1x64xf32>
    %14 = vector.broadcast %13 : vector<1x64xf32> to vector<2x64xf32>
    %15 = arith.addf %12, %14 : vector<2x64xf32>
    %c0_12 = arith.constant 0 : index
    %c0_13 = arith.constant 0 : index
    %16 = vector.load %arg6[%c0_12, %c0_13] : memref<2x64xf32, #tpu.memory_space<vmem>>, vector<2x64xf32>
    %17 = arith.mulf %15, %16 : vector<2x64xf32>
    %cst_14 = arith.constant dense<0.000000e+00> : vector<2xf32>
    %18 = vector.multi_reduction <add>, %17, %cst_14 [1] : vector<2x64xf32> to vector<2xf32>
    %19 = vector.shape_cast %18 : vector<2xf32> to vector<2x1xf32>
    %c0_15 = arith.constant 0 : index
    %c0_16 = arith.constant 0 : index
    %20 = vector.load %arg7[%c0_15, %c0_16] : memref<1x1xf32, #tpu.memory_space<vmem>>, vector<1x1xf32>
    %21 = vector.broadcast %20 : vector<1x1xf32> to vector<2x1xf32>
    %22 = arith.addf %19, %21 : vector<2x1xf32>
    %c0_17 = arith.constant 0 : index
    %c0_18 = arith.constant 0 : index
    %23 = vector.load %arg8[%c0_17, %c0_18] : memref<2x1xf32, #tpu.memory_space<vmem>>, vector<2x1xf32>
    tpu.vector_store %arg8[%c0_17, %c0_18], %22 {strides = array<i32>} : memref<2x1xf32, #tpu.memory_space<vmem>>, vector<2x1xf32>,
    return
  }
  func.func @transform_0(%arg0: i32) -> (i32, i32) {
    %c0_i32 = arith.constant 0 : i32
    %c0_i32_0 = arith.constant 0 : i32
    return %arg0, %c0_i32 : i32, i32
  }
  func.func @transform_1(%arg0: i32) -> (i32, i32) {
    %c0_i32 = arith.constant 0 : i32
    %c0_i32_0 = arith.constant 0 : i32
    %c0_i32_1 = arith.constant 0 : i32
    return %c0_i32, %c0_i32_0 : i32, i32
  }
  func.func @transform_2(%arg0: i32) -> (i32, i32) {
    %c0_i32 = arith.constant 0 : i32
    %c0_i32_0 = arith.constant 0 : i32
    %c0_i32_1 = arith.constant 0 : i32
    return %c0_i32, %c0_i32_0 : i32, i32
  }
  func.func @transform_3(%arg0: i32) -> (i32, i32) {
    %c0_i32 = arith.constant 0 : i32
    %c0_i32_0 = arith.constant 0 : i32
    %c0_i32_1 = arith.constant 0 : i32
    return %c0_i32, %c0_i32_0 : i32, i32
  }
  func.func @transform_4(%arg0: i32) -> (i32, i32) {
    %c0_i32 = arith.constant 0 : i32
    %c0_i32_0 = arith.constant 0 : i32
    %c0_i32_1 = arith.constant 0 : i32
    return %c0_i32, %c0_i32_0 : i32, i32
  }
  func.func @transform_5(%arg0: i32) -> (i32, i32) {
    %c0_i32 = arith.constant 0 : i32
    %c0_i32_0 = arith.constant 0 : i32
    return %arg0, %c0_i32 : i32, i32
  }
  func.func @transform_6(%arg0: i32) -> (i32, i32) {
    %c0_i32 = arith.constant 0 : i32
    %c0_i32_0 = arith.constant 0 : i32
    %c0_i32_1 = arith.constant 0 : i32
    return %c0_i32, %c0_i32_0 : i32, i32
  }
  func.func @transform_7(%arg0: i32) -> (i32, i32) {
    %c0_i32 = arith.constant 0 : i32
    %c0_i32_0 = arith.constant 0 : i32
    return %arg0, %c0_i32 : i32, i32
  }
}

</mosaic_0001>

<llo_original>
// kernel: _lambda_.4
$region0: #{_lambda_.4}
  #allocation0 [shape = 'u32[]', space=smem, size = 0x4, offset = 0x4, fixed_abs, tag = 'smem constant byte address 0x4 - core index']
  #allocation1 [shape = 'u32[72,128]{1,0:T(1,128)}', space=vmem, size = 0x9000, scoped, tag = 'internal scratch']
  %s0 = inlined_call_operand.vmem [shape: bf16[512,48], index: 0, kind: input, shape index: {}]
  %s1 = inlined_call_operand.vmem [shape: bf16[48,16], index: 1, kind: input, shape index: {}]
  %s2 = inlined_call_operand.vmem [shape: f32[1,16], index: 2, kind: input, shape index: {}]
  %s3 = inlined_call_operand.vmem [shape: f32[512,16], index: 3, kind: output, shape index: {}]
  %s4 = sld [smem:[#allocation0]]
  $region45: #{_lambda_.4} parent=0
    _
  %s6 = ssub.s32 1, %s4
  %s7 = scalar_select 0, %s6, %s4
  loop: start=0, step=1, limit=4
  $region2: #{_lambda_.4} parent=0 // loop_pre_header
    _
  $region3: #{_lambda_.4} parent=0 // loop_header
    %s9 = sphi 0, %s13
    %p10 = scmp.ge.s32.totalorder %s9, 4
    %s19 = sphi 0, %s21
    %s22 = sphi 0, %s19
    %s23 = sphi 0, %s22
    %s39 = sphi 0, %s23
    %s43 = sphi 0, %s43
    %s45 = sphi 0, %s43
    %s46 = sphi 0, %s45
    %s60 = sphi 0, %s46
    %s64 = sphi 0, %s64
    %s66 = sphi 0, %s64
    %s67 = sphi 0, %s66
    %s81 = sphi 0, %s67
    %s87 = sphi 0, %s89
    %s90 = sphi 0, %s87
    %s91 = sphi 0, %s90
    %s107 = sphi 0, %s91
  $region4: #{_lambda_.4} parent=0 // loop_header_branch
    %12 = sbr.rel (%p10) target = $region8
  $region5: #{_lambda_.4} parent=0 // loop_body
    %s14 = ssub.s32 %s9, 1
    %s15 = ssub.s32 %s9, 2
    %s16 = sadd.s32 %s9, 1
    %s17 = ssub.s32 %s9, %s16
    %p18 = scmp.eq.s32.totalorder %s17, 0
    %s20 = sadd.s32 %s19, 1
    %s21 = scalar_select %p18, %s19, %s20
    %p24 = pneg %p18
    %p25 = scmp.eq.s32.totalorder %s9, 1
    %p26 = por %p24, %p25
    %p27 = scmp.ne.s32.totalorder %s19, %s22
    %p28 = scmp.eq.s32.totalorder %s9, 0
    %p29 = por %p27, %p28
    %p30 = scmp.ne.s32.totalorder %s19, %s22
    %p31 = scmp.eq.s32.totalorder %s14, 1
    %p32 = por %p30, %p31
    %p33 = scmp.ne.s32.totalorder %s22, %s23
    %p34 = scmp.eq.s32.totalorder %s14, 0
    %p35 = por %p33, %p34
    %p36 = scmp.ne.s32.totalorder %s22, %s23
    %p37 = scmp.eq.s32.totalorder %s15, 1
    %p38 = por %p36, %p37
    %p40 = scmp.ne.s32.totalorder %s23, %s39
    %p41 = scmp.eq.s32.totalorder %s15, 0
    %p42 = por %p40, %p41
    %s44 = sadd.s32 %s43, 1
    %p47 = scmp.eq.s32.totalorder %s9, 1
    %p48 = scmp.ne.s32.totalorder %s43, %s45
    %p49 = scmp.eq.s32.totalorder %s9, 0
    %p50 = por %p48, %p49
    %p51 = scmp.ne.s32.totalorder %s43, %s45
    %p52 = scmp.eq.s32.totalorder %s14, 1
    %p53 = por %p51, %p52
    %p54 = scmp.ne.s32.totalorder %s45, %s46
    %p55 = scmp.eq.s32.totalorder %s14, 0
    %p56 = por %p54, %p55
    %p57 = scmp.ne.s32.totalorder %s45, %s46
    %p58 = scmp.eq.s32.totalorder %s15, 1
    %p59 = por %p57, %p58
    %p61 = scmp.ne.s32.totalorder %s46, %s60
    %p62 = scmp.eq.s32.totalorder %s15, 0
    %p63 = por %p61, %p62
    %s65 = sadd.s32 %s64, 1
    %p68 = scmp.eq.s32.totalorder %s9, 1
    %p69 = scmp.ne.s32.totalorder %s64, %s66
    %p70 = scmp.eq.s32.totalorder %s9, 0
    %p71 = por %p69, %p70
    %p72 = scmp.ne.s32.totalorder %s64, %s66
    %p73 = scmp.eq.s32.totalorder %s14, 1
    %p74 = por %p72, %p73
    %p75 = scmp.ne.s32.totalorder %s66, %s67
    %p76 = scmp.eq.s32.totalorder %s14, 0
    %p77 = por %p75, %p76
    %p78 = scmp.ne.s32.totalorder %s66, %s67
    %p79 = scmp.eq.s32.totalorder %s15, 1
    %p80 = por %p78, %p79
    %p82 = scmp.ne.s32.totalorder %s67, %s81
    %p83 = scmp.eq.s32.totalorder %s15, 0
    %p84 = por %p82, %p83
    %s85 = ssub.s32 %s9, %s16
    %p86 = scmp.eq.s32.totalorder %s85, 0
    %s88 = sadd.s32 %s87, 1
    %s89 = scalar_select %p86, %s87, %s88
    %p92 = pneg %p86
    %p93 = scmp.eq.s32.totalorder %s9, 1
    %p94 = por %p92, %p93
    %p95 = scmp.ne.s32.totalorder %s87, %s90
    %p96 = scmp.eq.s32.totalorder %s9, 0
    %p97 = por %p95, %p96
    %p98 = scmp.ne.s32.totalorder %s87, %s90
    %p99 = scmp.eq.s32.totalorder %s14, 1
    %p100 = por %p98, %p99
    %p101 = scmp.ne.s32.totalorder %s90, %s91
    %p102 = scmp.eq.s32.totalorder %s14, 0
    %p103 = por %p101, %p102
    %p104 = scmp.ne.s32.totalorder %s90, %s91
    %p105 = scmp.eq.s32.totalorder %s15, 1
    %p106 = por %p104, %p105
    %p108 = scmp.ne.s32.totalorder %s91, %s107
    %p109 = scmp.eq.s32.totalorder %s15, 0
    %p110 = por %p108, %p109
    %p111 = scmp.le.s32.totalorder 1, %s9
    %p112 = scmp.lt.s32.totalorder %s9, 3
    %p113 = pnand %p111, %p112
    %p114 = pneg %p113
    // Predicated region
    $region9: #{_lambda_.4} parent=5 // pred_check
      _
    $region10: #{_lambda_.4} parent=5 // pred_check_branch
      %116 = sbr.rel (%p113) target = $region12
    $region11: #{_lambda_.4} parent=5 // pred_region
      %s117 = ssub.s32 %s9, 1
      // Predicated region
      $region13: #{_lambda_.4} parent=11 // pred_check
        %p118 = pneg %p56
      $region14: #{_lambda_.4} parent=11 // pred_check_branch
        %120 = sbr.rel (%p118) target = $region16
      $region15: #{_lambda_.4} parent=11 // pred_region
        _
      $region16: #{_lambda_.4} parent=11 // pred_fallthru
        _
      // Predicated region
      $region17: #{_lambda_.4} parent=11 // pred_check
        %p121 = pneg %p77
      $region18: #{_lambda_.4} parent=11 // pred_check_branch
        %123 = sbr.rel (%p121) target = $region20
      $region19: #{_lambda_.4} parent=11 // pred_region
        _
      $region20: #{_lambda_.4} parent=11 // pred_fallthru
        _
    $region12: #{_lambda_.4} parent=5 // pred_fallthru
      _
    %p124 = scmp.lt.s32.totalorder %s9, 2
    // Predicated region
    $region21: #{_lambda_.4} parent=5 // pred_check
      %p125 = pneg %p124
    $region22: #{_lambda_.4} parent=5 // pred_check_branch
      %127 = sbr.rel (%p125) target = $region24
    $region23: #{_lambda_.4} parent=5 // pred_region
      // Predicated region
      $region25: #{_lambda_.4} parent=23 // pred_check
        %p128 = pneg %p29
      $region26: #{_lambda_.4} parent=23 // pred_check_branch
        %130 = sbr.rel (%p128) target = $region28
      $region27: #{_lambda_.4} parent=23 // pred_region
        %s131 = smul.u32 32, %s9
        %p132 = scmp.lt.s32.totalorder %s131, 63
        %s133 = scalar_select %p132, %s131, 63
        %s134 = smul.addr %s133, 4
        %s135 = scalar_lea.vmem %s0, %s134
        %s136 = smul.u32 32, %s9
      $region28: #{_lambda_.4} parent=23 // pred_fallthru
        _
    $region24: #{_lambda_.4} parent=5 // pred_fallthru
      _
    %p137 = scmp.le.s32.totalorder 1, %s9
    %p138 = scmp.lt.s32.totalorder %s9, 3
    %p139 = pnand %p137, %p138
    %p140 = pneg %p139
    // Predicated region
    $region29: #{_lambda_.4} parent=5 // pred_check
      _
    $region30: #{_lambda_.4} parent=5 // pred_check_branch
      %142 = sbr.rel (%p139) target = $region32
    $region31: #{_lambda_.4} parent=5 // pred_region
      %s143 = ssub.s32 %s9, 1
      %s144 = smul.u32 32, %s14
      %p145 = scmp.lt.s32.totalorder %s144, 63
      %s146 = scalar_select %p145, %s144, 63
      %s147 = smul.addr %s146, 4
      %s148 = scalar_lea.vmem %s0, %s147
      %p149 = pneg %p35
      %p150 = pneg %p32
      %p151 = pneg %p56
      %p152 = pneg %p53
      %p153 = pneg %p77
      %p154 = pneg %p74
      %p155 = pneg %p103
      %p156 = pneg %p100
      %s157 = smul.u32 32, %s14
      %p158 = scmp.lt.s32.totalorder %s157, 63
      %s159 = scalar_select %p158, %s157, 63
      %s160 = smul.addr %s159, 8
      %s161 = scalar_lea.vmem %s3, %s160
      %s162 = smul.u32 32, %s14
      %p163 = scmp.lt.s32.totalorder %s162, 63
      %s164 = scalar_select %p163, %s162, 63
      %s165 = smul.addr %s164, 4
      %s166 = scalar_lea.vmem %s0, %s165
      %s167 = smul.u32 32, %s14
      %s168 = smul.u32 32, %s14
      %p169 = scmp.lt.s32.totalorder %s168, 63
      %s170 = scalar_select %p169, %s168, 63
      %s171 = smul.addr %s170, 8
      %s172 = scalar_lea.vmem %s3, %s171
      %s173 = smul.u32 32, %s14
      %v175 = vld [vmem:[%s166] sm:$0xf]
      %v176 = vld [vmem:[%s166 + $0x4] sm:$0xf]
      %v177 = vld [vmem:[%s166 + $0x8] sm:$0xf]
      %v178 = vld [vmem:[%s166 + $0xc] sm:$0xf]
      %v179 = vld [vmem:[%s166 + $0x10] sm:$0xf]
      %v180 = vld [vmem:[%s166 + $0x14] sm:$0xf]
      %v181 = vld [vmem:[%s166 + $0x18] sm:$0xf]
      %v182 = vld [vmem:[%s166 + $0x1c] sm:$0xf]
      %v183 = vld [vmem:[%s166 + $0x20] sm:$0xf]
      %v184 = vld [vmem:[%s166 + $0x24] sm:$0xf]
      %v185 = vld [vmem:[%s166 + $0x28] sm:$0xf]
      %v186 = vld [vmem:[%s166 + $0x2c] sm:$0xf]
      %v187 = vld [vmem:[%s166 + $0x30] sm:$0xf]
      %v188 = vld [vmem:[%s166 + $0x34] sm:$0xf]
      %v189 = vld [vmem:[%s166 + $0x38] sm:$0xf]
      %v190 = vld [vmem:[%s166 + $0x3c] sm:$0xf]
      %v191 = vld [vmem:[%s166 + $0x40] sm:$0xf]
      %v192 = vld [vmem:[%s166 + $0x44] sm:$0xf]
      %v193 = vld [vmem:[%s166 + $0x48] sm:$0xf]
      %v194 = vld [vmem:[%s166 + $0x4c] sm:$0xf]
      %v195 = vld [vmem:[%s166 + $0x50] sm:$0xf]
      %v196 = vld [vmem:[%s166 + $0x54] sm:$0xf]
      %v197 = vld [vmem:[%s166 + $0x58] sm:$0xf]
      %v198 = vld [vmem:[%s166 + $0x5c] sm:$0xf]
      %v199 = vld [vmem:[%s166 + $0x60] sm:$0xf]
      %v200 = vld [vmem:[%s166 + $0x64] sm:$0xf]
      %v201 = vld [vmem:[%s166 + $0x68] sm:$0xf]
      %v202 = vld [vmem:[%s166 + $0x6c] sm:$0xf]
      %v203 = vld [vmem:[%s166 + $0x70] sm:$0xf]
      %v204 = vld [vmem:[%s166 + $0x74] sm:$0xf]
      %v205 = vld [vmem:[%s166 + $0x78] sm:$0xf]
      %v206 = vld [vmem:[%s166 + $0x7c] sm:$0xf]
      %v207 = vld [vmem:[%s1] sm:$0xf]
      %v208 = vld [vmem:[%s1 + $0x4] sm:$0xf]
      %v209 = vld [vmem:[%s1 + $0x8] sm:$0xf]
      %v210 = vld [vmem:[%s1 + $0xc] sm:$0xf]
      %v211 = vld [vmem:[%s1 + $0x10] sm:$0xf]
      %v212 = vld [vmem:[%s1 + $0x14] sm:$0xf]
      %v213 = vld [vmem:[%s2] sm:$0x1]
      %v215 = vperm.slane %v213, 0
      %v249 = vunpack.c.l.b16 %v175
      %v250 = vunpack.c.l.b16 %v176
      %v251 = vunpack.c.l.b16 %v177
      %v252 = vunpack.c.l.b16 %v178
      %v253 = vunpack.c.l.b16 %v179
      %v254 = vunpack.c.l.b16 %v180
      %v255 = vunpack.c.l.b16 %v181
      %v256 = vunpack.c.l.b16 %v182
      %v257 = vunpack.c.l.b16 %v183
      %v258 = vunpack.c.l.b16 %v184
      %v259 = vunpack.c.l.b16 %v185
      %v260 = vunpack.c.l.b16 %v186
      %v261 = vunpack.c.l.b16 %v187
      %v262 = vunpack.c.l.b16 %v188
      %v263 = vunpack.c.l.b16 %v189
      %v264 = vunpack.c.l.b16 %v190
      %v265 = vunpack.c.l.b16 %v191
      %v266 = vunpack.c.l.b16 %v192
      %v267 = vunpack.c.l.b16 %v193
      %v268 = vunpack.c.l.b16 %v194
      %v269 = vunpack.c.l.b16 %v195
      %v270 = vunpack.c.l.b16 %v196
      %v271 = vunpack.c.l.b16 %v197
      %v272 = vunpack.c.l.b16 %v198
      %v273 = vunpack.c.l.b16 %v199
      %v274 = vunpack.c.l.b16 %v200
      %v275 = vunpack.c.l.b16 %v201
      %v276 = vunpack.c.l.b16 %v202
      %v277 = vunpack.c.l.b16 %v203
      %v278 = vunpack.c.l.b16 %v204
      %v279 = vunpack.c.l.b16 %v205
      %v280 = vunpack.c.l.b16 %v206
      %v281 = vpack.c.b16 %v250, %v249
      %v282 = vpack.c.b16 %v252, %v251
      %v283 = vpack.c.b16 %v254, %v253
      %v284 = vpack.c.b16 %v256, %v255
      %v285 = vpack.c.b16 %v258, %v257
      %v286 = vpack.c.b16 %v260, %v259
      %v287 = vpack.c.b16 %v262, %v261
      %v288 = vpack.c.b16 %v264, %v263
      %v289 = vpack.c.b16 %v266, %v265
      %v290 = vpack.c.b16 %v268, %v267
      %v291 = vpack.c.b16 %v270, %v269
      %v292 = vpack.c.b16 %v272, %v271
      %v293 = vpack.c.b16 %v274, %v273
      %v294 = vpack.c.b16 %v276, %v275
      %v295 = vpack.c.b16 %v278, %v277
      %v296 = vpack.c.b16 %v280, %v279
      %v303 = vunpack.c.l.b16 %v207
      %v304 = vunpack.c.l.b16 %v208
      %v305 = vunpack.c.l.b16 %v209
      %v306 = vunpack.c.l.b16 %v210
      %v307 = vunpack.c.l.b16 %v211
      %v308 = vunpack.c.l.b16 %v212
      %v309 = vpack.c.b16 %v304, %v303
      %v310 = vpack.c.b16 %v306, %v305
      %v311 = vpack.c.b16 %v308, %v307
      %vm315 = vcmask 392192
      %v317 = vsel %vm315, %v281, 0
      %v320 = vsel %vm315, %v282, 0
      %v323 = vsel %vm315, %v283, 0
      %v326 = vsel %vm315, %v284, 0
      %v329 = vsel %vm315, %v285, 0
      %v332 = vsel %vm315, %v286, 0
      %v335 = vsel %vm315, %v287, 0
      %v338 = vsel %vm315, %v288, 0
      %v341 = vsel %vm315, %v289, 0
      %v344 = vsel %vm315, %v290, 0
      %v347 = vsel %vm315, %v291, 0
      %v350 = vsel %vm315, %v292, 0
      %v353 = vsel %vm315, %v293, 0
      %v356 = vsel %vm315, %v294, 0
      %v359 = vsel %vm315, %v295, 0
      %v362 = vsel %vm315, %v296, 0
      %364 = vmatpush.bf16.msra.mxu0 0
      %365 = vmatpush.bf16.msra.mxu0 0
      %366 = vmatpush.bf16.msra.mxu0 0
      %367 = vmatpush.bf16.msra.mxu0 0
      %368 = vmatpush.bf16.msra.mxu0 0
      %369 = vmatpush.bf16.msra.mxu0 %v311
      %370 = vmatpush.bf16.msra.mxu0 %v310
      %371 = vmatpush.bf16.msra.mxu0 %v309
      %372 = vmatmul.bf16.gmra.mxu0 %v317
      %v373 = vpop.f32.mrf.mxu0
      %v374 = vadd.f32 %v215, %v373
      %v375 = vpop.f32.mrf.mxu0
      %v376 = vadd.f32 %v215, %v375
      %377 = vmatmul.bf16.gmra.mxu0 %v320
      %v378 = vpop.f32.mrf.mxu0
      %v379 = vadd.f32 %v215, %v378
      %v380 = vpop.f32.mrf.mxu0
      %v381 = vadd.f32 %v215, %v380
      %382 = vmatmul.bf16.gmra.mxu0 %v323
      %v383 = vpop.f32.mrf.mxu0
      %v384 = vadd.f32 %v215, %v383
      %v385 = vpop.f32.mrf.mxu0
      %v386 = vadd.f32 %v215, %v385
      %387 = vmatmul.bf16.gmra.mxu0 %v326
      %v388 = vpop.f32.mrf.mxu0
      %v389 = vadd.f32 %v215, %v388
      %v390 = vpop.f32.mrf.mxu0
      %v391 = vadd.f32 %v215, %v390
      %392 = vmatmul.bf16.gmra.mxu0 %v329
      %v393 = vpop.f32.mrf.mxu0
      %v394 = vadd.f32 %v215, %v393
      %v395 = vpop.f32.mrf.mxu0
      %v396 = vadd.f32 %v215, %v395
      %397 = vmatmul.bf16.gmra.mxu0 %v332
      %v398 = vpop.f32.mrf.mxu0
      %v399 = vadd.f32 %v215, %v398
      %v400 = vpop.f32.mrf.mxu0
      %v401 = vadd.f32 %v215, %v400
      %402 = vmatmul.bf16.gmra.mxu0 %v335
      %v403 = vpop.f32.mrf.mxu0
      %v404 = vadd.f32 %v215, %v403
      %v405 = vpop.f32.mrf.mxu0
      %v406 = vadd.f32 %v215, %v405
      %407 = vmatmul.bf16.gmra.mxu0 %v338
      %v408 = vpop.f32.mrf.mxu0
      %v409 = vadd.f32 %v215, %v408
      %v410 = vpop.f32.mrf.mxu0
      %v411 = vadd.f32 %v215, %v410
      %412 = vmatmul.bf16.gmra.mxu0 %v341
      %v413 = vpop.f32.mrf.mxu0
      %v414 = vadd.f32 %v215, %v413
      %v415 = vpop.f32.mrf.mxu0
      %v416 = vadd.f32 %v215, %v415
      %417 = vmatmul.bf16.gmra.mxu0 %v344
      %v418 = vpop.f32.mrf.mxu0
      %v419 = vadd.f32 %v215, %v418
      %v420 = vpop.f32.mrf.mxu0
      %v421 = vadd.f32 %v215, %v420
      %422 = vmatmul.bf16.gmra.mxu0 %v347
      %v423 = vpop.f32.mrf.mxu0
      %v424 = vadd.f32 %v215, %v423
      %v425 = vpop.f32.mrf.mxu0
      %v426 = vadd.f32 %v215, %v425
      %427 = vmatmul.bf16.gmra.mxu0 %v350
      %v428 = vpop.f32.mrf.mxu0
      %v429 = vadd.f32 %v215, %v428
      %v430 = vpop.f32.mrf.mxu0
      %v431 = vadd.f32 %v215, %v430
      %432 = vmatmul.bf16.gmra.mxu0 %v353
      %v433 = vpop.f32.mrf.mxu0
      %v434 = vadd.f32 %v215, %v433
      %v435 = vpop.f32.mrf.mxu0
      %v436 = vadd.f32 %v215, %v435
      %437 = vmatmul.bf16.gmra.mxu0 %v356
      %v438 = vpop.f32.mrf.mxu0
      %v439 = vadd.f32 %v215, %v438
      %v440 = vpop.f32.mrf.mxu0
      %v441 = vadd.f32 %v215, %v440
      %442 = vmatmul.bf16.gmra.mxu0 %v359
      %v443 = vpop.f32.mrf.mxu0
      %v444 = vadd.f32 %v215, %v443
      %v445 = vpop.f32.mrf.mxu0
      %v446 = vadd.f32 %v215, %v445
      %447 = vmatmul.bf16.gmra.mxu0 %v362
      %v448 = vpop.f32.mrf.mxu0
      %v449 = vadd.f32 %v215, %v448
      %v450 = vpop.f32.mrf.mxu0
      %v451 = vadd.f32 %v215, %v450
      %452 = vdwg.mxu0
      %vm453 = vcmp.ge.f32.partialorder %v374, 0.0
      %vm454 = vcmp.ge.f32.partialorder %v376, 0.0
      %vm455 = vcmp.ge.f32.partialorder %v379, 0.0
      %vm456 = vcmp.ge.f32.partialorder %v381, 0.0
      %vm457 = vcmp.ge.f32.partialorder %v384, 0.0
      %vm458 = vcmp.ge.f32.partialorder %v386, 0.0
      %vm459 = vcmp.ge.f32.partialorder %v389, 0.0
      %vm460 = vcmp.ge.f32.partialorder %v391, 0.0
      %vm461 = vcmp.ge.f32.partialorder %v394, 0.0
      %vm462 = vcmp.ge.f32.partialorder %v396, 0.0
      %vm463 = vcmp.ge.f32.partialorder %v399, 0.0
      %vm464 = vcmp.ge.f32.partialorder %v401, 0.0
      %vm465 = vcmp.ge.f32.partialorder %v404, 0.0
      %vm466 = vcmp.ge.f32.partialorder %v406, 0.0
      %vm467 = vcmp.ge.f32.partialorder %v409, 0.0
      %vm468 = vcmp.ge.f32.partialorder %v411, 0.0
      %vm469 = vcmp.ge.f32.partialorder %v414, 0.0
      %vm470 = vcmp.ge.f32.partialorder %v416, 0.0
      %vm471 = vcmp.ge.f32.partialorder %v419, 0.0
      %vm472 = vcmp.ge.f32.partialorder %v421, 0.0
      %vm473 = vcmp.ge.f32.partialorder %v424, 0.0
      %vm474 = vcmp.ge.f32.partialorder %v426, 0.0
      %vm475 = vcmp.ge.f32.partialorder %v429, 0.0
      %vm476 = vcmp.ge.f32.partialorder %v431, 0.0
      %vm477 = vcmp.ge.f32.partialorder %v434, 0.0
      %vm478 = vcmp.ge.f32.partialorder %v436, 0.0
      %vm479 = vcmp.ge.f32.partialorder %v439, 0.0
      %vm480 = vcmp.ge.f32.partialorder %v441, 0.0
      %vm481 = vcmp.ge.f32.partialorder %v444, 0.0
      %vm482 = vcmp.ge.f32.partialorder %v446, 0.0
      %vm483 = vcmp.ge.f32.partialorder %v449, 0.0
      %vm484 = vcmp.ge.f32.partialorder %v451, 0.0
      %v485 = vmul.f32 %v374, 0.2
      %v486 = vmul.f32 %v376, 0.2
      %v487 = vmul.f32 %v379, 0.2
      %v488 = vmul.f32 %v381, 0.2
      %v489 = vmul.f32 %v384, 0.2
      %v490 = vmul.f32 %v386, 0.2
      %v491 = vmul.f32 %v389, 0.2
      %v492 = vmul.f32 %v391, 0.2
      %v493 = vmul.f32 %v394, 0.2
      %v494 = vmul.f32 %v396, 0.2
      %v495 = vmul.f32 %v399, 0.2
      %v496 = vmul.f32 %v401, 0.2
      %v497 = vmul.f32 %v404, 0.2
      %v498 = vmul.f32 %v406, 0.2
      %v499 = vmul.f32 %v409, 0.2
      %v500 = vmul.f32 %v411, 0.2
      %v501 = vmul.f32 %v414, 0.2
      %v502 = vmul.f32 %v416, 0.2
      %v503 = vmul.f32 %v419, 0.2
      %v504 = vmul.f32 %v421, 0.2
      %v505 = vmul.f32 %v424, 0.2
      %v506 = vmul.f32 %v426, 0.2
      %v507 = vmul.f32 %v429, 0.2
      %v508 = vmul.f32 %v431, 0.2
      %v509 = vmul.f32 %v434, 0.2
      %v510 = vmul.f32 %v436, 0.2
      %v511 = vmul.f32 %v439, 0.2
      %v512 = vmul.f32 %v441, 0.2
      %v513 = vmul.f32 %v444, 0.2
      %v514 = vmul.f32 %v446, 0.2
      %v515 = vmul.f32 %v449, 0.2
      %v516 = vmul.f32 %v451, 0.2
      %v517 = vsel %vm453, %v374, %v485
      %v518 = vsel %vm454, %v376, %v486
      %v519 = vsel %vm455, %v379, %v487
      %v520 = vsel %vm456, %v381, %v488
      %v521 = vsel %vm457, %v384, %v489
      %v522 = vsel %vm458, %v386, %v490
      %v523 = vsel %vm459, %v389, %v491
      %v524 = vsel %vm460, %v391, %v492
      %v525 = vsel %vm461, %v394, %v493
      %v526 = vsel %vm462, %v396, %v494
      %v527 = vsel %vm463, %v399, %v495
      %v528 = vsel %vm464, %v401, %v496
      %v529 = vsel %vm465, %v404, %v497
      %v530 = vsel %vm466, %v406, %v498
      %v531 = vsel %vm467, %v409, %v499
      %v532 = vsel %vm468, %v411, %v500
      %v533 = vsel %vm469, %v414, %v501
      %v534 = vsel %vm470, %v416, %v502
      %v535 = vsel %vm471, %v419, %v503
      %v536 = vsel %vm472, %v421, %v504
      %v537 = vsel %vm473, %v424, %v505
      %v538 = vsel %vm474, %v426, %v506
      %v539 = vsel %vm475, %v429, %v507
      %v540 = vsel %vm476, %v431, %v508
      %v541 = vsel %vm477, %v434, %v509
      %v542 = vsel %vm478, %v436, %v510
      %v543 = vsel %vm479, %v439, %v511
      %v544 = vsel %vm480, %v441, %v512
      %v545 = vsel %vm481, %v444, %v513
      %v546 = vsel %vm482, %v446, %v514
      %v547 = vsel %vm483, %v449, %v515
      %v548 = vsel %vm484, %v451, %v516
      %vm549 = vcmask 130048
      %550 = vst.msk [vmem:[%s172] sm:$0xff] %vm549, %v517
      %551 = vst.msk [vmem:[%s172 + $0x8] sm:$0xff] %vm549, %v518
      %552 = vst.msk [vmem:[%s172 + $0x10] sm:$0xff] %vm549, %v519
      %553 = vst.msk [vmem:[%s172 + $0x18] sm:$0xff] %vm549, %v520
      %554 = vst.msk [vmem:[%s172 + $0x20] sm:$0xff] %vm549, %v521
      %555 = vst.msk [vmem:[%s172 + $0x28] sm:$0xff] %vm549, %v522
      %556 = vst.msk [vmem:[%s172 + $0x30] sm:$0xff] %vm549, %v523
      %557 = vst.msk [vmem:[%s172 + $0x38] sm:$0xff] %vm549, %v524
      %558 = vst.msk [vmem:[%s172 + $0x40] sm:$0xff] %vm549, %v525
      %559 = vst.msk [vmem:[%s172 + $0x48] sm:$0xff] %vm549, %v526
      %560 = vst.msk [vmem:[%s172 + $0x50] sm:$0xff] %vm549, %v527
      %561 = vst.msk [vmem:[%s172 + $0x58] sm:$0xff] %vm549, %v528
      %562 = vst.msk [vmem:[%s172 + $0x60] sm:$0xff] %vm549, %v529
      %563 = vst.msk [vmem:[%s172 + $0x68] sm:$0xff] %vm549, %v530
      %564 = vst.msk [vmem:[%s172 + $0x70] sm:$0xff] %vm549, %v531
      %565 = vst.msk [vmem:[%s172 + $0x78] sm:$0xff] %vm549, %v532
      %566 = vst.msk [vmem:[%s172 + $0x80] sm:$0xff] %vm549, %v533
      %567 = vst.msk [vmem:[%s172 + $0x88] sm:$0xff] %vm549, %v534
      %568 = vst.msk [vmem:[%s172 + $0x90] sm:$0xff] %vm549, %v535
      %569 = vst.msk [vmem:[%s172 + $0x98] sm:$0xff] %vm549, %v536
      %570 = vst.msk [vmem:[%s172 + $0xa0] sm:$0xff] %vm549, %v537
      %571 = vst.msk [vmem:[%s172 + $0xa8] sm:$0xff] %vm549, %v538
      %572 = vst.msk [vmem:[%s172 + $0xb0] sm:$0xff] %vm549, %v539
      %573 = vst.msk [vmem:[%s172 + $0xb8] sm:$0xff] %vm549, %v540
      %574 = vst.msk [vmem:[%s172 + $0xc0] sm:$0xff] %vm549, %v541
      %575 = vst.msk [vmem:[%s172 + $0xc8] sm:$0xff] %vm549, %v542
      %576 = vst.msk [vmem:[%s172 + $0xd0] sm:$0xff] %vm549, %v543
      %577 = vst.msk [vmem:[%s172 + $0xd8] sm:$0xff] %vm549, %v544
      %578 = vst.msk [vmem:[%s172 + $0xe0] sm:$0xff] %vm549, %v545
      %579 = vst.msk [vmem:[%s172 + $0xe8] sm:$0xff] %vm549, %v546
      %580 = vst.msk [vmem:[%s172 + $0xf0] sm:$0xff] %vm549, %v547
      %581 = vst.msk [vmem:[%s172 + $0xf8] sm:$0xff] %vm549, %v548
      %s582 = smul.u32 32, %s14
      %p583 = scmp.lt.s32.totalorder %s582, 63
      %s584 = scalar_select %p583, %s582, 63
      %s585 = smul.addr %s584, 8
      %s586 = scalar_lea.vmem %s3, %s585
      // Predicated region
      $region33: #{_lambda_.4} parent=31 // pred_check
        %p587 = pneg %p100
      $region34: #{_lambda_.4} parent=31 // pred_check_branch
        %589 = sbr.rel (%p587) target = $region36
      $region35: #{_lambda_.4} parent=31 // pred_region
        %s590 = smul.u32 32, %s14
      $region36: #{_lambda_.4} parent=31 // pred_fallthru
        _
    $region32: #{_lambda_.4} parent=5 // pred_fallthru
      _
    %p591 = scmp.le.s32.totalorder 2, %s9
    // Predicated region
    $region37: #{_lambda_.4} parent=5 // pred_check
      %p592 = pneg %p591
    $region38: #{_lambda_.4} parent=5 // pred_check_branch
      %594 = sbr.rel (%p592) target = $region40
    $region39: #{_lambda_.4} parent=5 // pred_region
      %s595 = ssub.s32 %s9, 2
      // Predicated region
      $region41: #{_lambda_.4} parent=39 // pred_check
        %p596 = pneg %p106
      $region42: #{_lambda_.4} parent=39 // pred_check_branch
        %598 = sbr.rel (%p596) target = $region44
      $region43: #{_lambda_.4} parent=39 // pred_region
        %s599 = smul.u32 32, %s15
        %p600 = scmp.lt.s32.totalorder %s599, 63
        %s601 = scalar_select %p600, %s599, 63
        %s602 = smul.addr %s601, 8
        %s603 = scalar_lea.vmem %s3, %s602
      $region44: #{_lambda_.4} parent=39 // pred_fallthru
        _
    $region40: #{_lambda_.4} parent=5 // pred_fallthru
      _
  $region6: #{_lambda_.4} parent=0 // loop_footer
    %s13 = sadd.s32 1, %s9
  $region7: #{_lambda_.4} parent=0 // loop_footer_branch
    %8 = sbr.rel target = $region3
  $region8: #{_lambda_.4} parent=0 // loop_exit
    _

// kernel: _lambda_.5
$region0: #{_lambda_.5}
  #allocation0 [shape = 'u32[]', space=smem, size = 0x4, offset = 0x4, fixed_abs, tag = 'smem constant byte address 0x4 - core index']
  #allocation1 [shape = 'u32[72,128]{1,0:T(1,128)}', space=vmem, size = 0x9000, scoped, tag = 'internal scratch']
  %s0 = inlined_call_operand.vmem [shape: bf16[128,256], index: 0, kind: input, shape index: {}]
  %s1 = inlined_call_operand.vmem [shape: bf16[256,32], index: 1, kind: input, shape index: {}]
  %s2 = inlined_call_operand.vmem [shape: f32[1,32], index: 2, kind: input, shape index: {}]
  %s3 = inlined_call_operand.vmem [shape: f32[128,32], index: 3, kind: output, shape index: {}]
  %s4 = sld [smem:[#allocation0]]
  $region22: #{_lambda_.5} parent=0
    _
  %s6 = ssub.s32 1, %s4
  %s7 = scalar_select 0, %s6, %s4
  // Predicated region
  $region2: #{_lambda_.5} parent=0 // pred_check
    _
  $region3: #{_lambda_.5} parent=0 // pred_check_branch
    %9 = sbr.rel (0) target = $region5
  $region4: #{_lambda_.5} parent=0 // pred_region
    _
  $region5: #{_lambda_.5} parent=0 // pred_fallthru
    _
  // Predicated region
  $region6: #{_lambda_.5} parent=0 // pred_check
    _
  $region7: #{_lambda_.5} parent=0 // pred_check_branch
    %11 = sbr.rel (0) target = $region9
  $region8: #{_lambda_.5} parent=0 // pred_region
    _
  $region9: #{_lambda_.5} parent=0 // pred_fallthru
    _
  // Predicated region
  $region10: #{_lambda_.5} parent=0 // pred_check
    _
  $region11: #{_lambda_.5} parent=0 // pred_check_branch
    %13 = sbr.rel (0) target = $region13
  $region12: #{_lambda_.5} parent=0 // pred_region
    _
  $region13: #{_lambda_.5} parent=0 // pred_fallthru
    _
  %v14 = vld [vmem:[%s0] sm:$0xff]
  %v15 = vld [vmem:[%s0 + $0x8] sm:$0xff]
  %v16 = vld [vmem:[%s0 + $0x10] sm:$0xff]
  %v17 = vld [vmem:[%s0 + $0x18] sm:$0xff]
  %v18 = vld [vmem:[%s0 + $0x20] sm:$0xff]
  %v19 = vld [vmem:[%s0 + $0x28] sm:$0xff]
  %v20 = vld [vmem:[%s0 + $0x30] sm:$0xff]
  %v21 = vld [vmem:[%s0 + $0x38] sm:$0xff]
  %v22 = vld [vmem:[%s0 + $0x40] sm:$0xff]
  %v23 = vld [vmem:[%s0 + $0x48] sm:$0xff]
  %v24 = vld [vmem:[%s0 + $0x50] sm:$0xff]
  %v25 = vld [vmem:[%s0 + $0x58] sm:$0xff]
  %v26 = vld [vmem:[%s0 + $0x60] sm:$0xff]
  %v27 = vld [vmem:[%s0 + $0x68] sm:$0xff]
  %v28 = vld [vmem:[%s0 + $0x70] sm:$0xff]
  %v29 = vld [vmem:[%s0 + $0x78] sm:$0xff]
  %v30 = vld [vmem:[%s1] sm:$0xf]
  %v31 = vld [vmem:[%s1 + $0x4] sm:$0xf]
  %v32 = vld [vmem:[%s1 + $0x8] sm:$0xf]
  %v33 = vld [vmem:[%s1 + $0xc] sm:$0xf]
  %v34 = vld [vmem:[%s1 + $0x10] sm:$0xf]
  %v35 = vld [vmem:[%s1 + $0x14] sm:$0xf]
  %v36 = vld [vmem:[%s1 + $0x18] sm:$0xf]
  %v37 = vld [vmem:[%s1 + $0x1c] sm:$0xf]
  %v38 = vld [vmem:[%s1 + $0x20] sm:$0xf]
  %v39 = vld [vmem:[%s1 + $0x24] sm:$0xf]
  %v40 = vld [vmem:[%s1 + $0x28] sm:$0xf]
  %v41 = vld [vmem:[%s1 + $0x2c] sm:$0xf]
  %v42 = vld [vmem:[%s1 + $0x30] sm:$0xf]
  %v43 = vld [vmem:[%s1 + $0x34] sm:$0xf]
  %v44 = vld [vmem:[%s1 + $0x38] sm:$0xf]
  %v45 = vld [vmem:[%s1 + $0x3c] sm:$0xf]
  %v46 = vld [vmem:[%s1 + $0x40] sm:$0xf]
  %v47 = vld [vmem:[%s1 + $0x44] sm:$0xf]
  %v48 = vld [vmem:[%s1 + $0x48] sm:$0xf]
  %v49 = vld [vmem:[%s1 + $0x4c] sm:$0xf]
  %v50 = vld [vmem:[%s1 + $0x50] sm:$0xf]
  %v51 = vld [vmem:[%s1 + $0x54] sm:$0xf]
  %v52 = vld [vmem:[%s1 + $0x58] sm:$0xf]
  %v53 = vld [vmem:[%s1 + $0x5c] sm:$0xf]
  %v54 = vld [vmem:[%s1 + $0x60] sm:$0xf]
  %v55 = vld [vmem:[%s1 + $0x64] sm:$0xf]
  %v56 = vld [vmem:[%s1 + $0x68] sm:$0xf]
  %v57 = vld [vmem:[%s1 + $0x6c] sm:$0xf]
  %v58 = vld [vmem:[%s1 + $0x70] sm:$0xf]
  %v59 = vld [vmem:[%s1 + $0x74] sm:$0xf]
  %v60 = vld [vmem:[%s1 + $0x78] sm:$0xf]
  %v61 = vld [vmem:[%s1 + $0x7c] sm:$0xf]
  %v62 = vld [vmem:[%s2] sm:$0x1]
  %v64 = vperm.slane %v62, 0
  %v82 = vunpack.c.l.b16 %v14
  %v83 = vunpack.c.h.b16 %v14
  %v84 = vunpack.c.l.b16 %v15
  %v85 = vunpack.c.h.b16 %v15
  %v86 = vunpack.c.l.b16 %v16
  %v87 = vunpack.c.h.b16 %v16
  %v88 = vunpack.c.l.b16 %v17
  %v89 = vunpack.c.h.b16 %v17
  %v90 = vunpack.c.l.b16 %v18
  %v91 = vunpack.c.h.b16 %v18
  %v92 = vunpack.c.l.b16 %v19
  %v93 = vunpack.c.h.b16 %v19
  %v94 = vunpack.c.l.b16 %v20
  %v95 = vunpack.c.h.b16 %v20
  %v96 = vunpack.c.l.b16 %v21
  %v97 = vunpack.c.h.b16 %v21
  %v98 = vunpack.c.l.b16 %v22
  %v99 = vunpack.c.h.b16 %v22
  %v100 = vunpack.c.l.b16 %v23
  %v101 = vunpack.c.h.b16 %v23
  %v102 = vunpack.c.l.b16 %v24
  %v103 = vunpack.c.h.b16 %v24
  %v104 = vunpack.c.l.b16 %v25
  %v105 = vunpack.c.h.b16 %v25
  %v106 = vunpack.c.l.b16 %v26
  %v107 = vunpack.c.h.b16 %v26
  %v108 = vunpack.c.l.b16 %v27
  %v109 = vunpack.c.h.b16 %v27
  %v110 = vunpack.c.l.b16 %v28
  %v111 = vunpack.c.h.b16 %v28
  %v112 = vunpack.c.l.b16 %v29
  %v113 = vunpack.c.h.b16 %v29
  %v114 = vpack.c.b16 %v84, %v82
  %v115 = vpack.c.b16 %v85, %v83
  %v116 = vpack.c.b16 %v88, %v86
  %v117 = vpack.c.b16 %v89, %v87
  %v118 = vpack.c.b16 %v92, %v90
  %v119 = vpack.c.b16 %v93, %v91
  %v120 = vpack.c.b16 %v96, %v94
  %v121 = vpack.c.b16 %v97, %v95
  %v122 = vpack.c.b16 %v100, %v98
  %v123 = vpack.c.b16 %v101, %v99
  %v124 = vpack.c.b16 %v104, %v102
  %v125 = vpack.c.b16 %v105, %v103
  %v126 = vpack.c.b16 %v108, %v106
  %v127 = vpack.c.b16 %v109, %v107
  %v128 = vpack.c.b16 %v112, %v110
  %v129 = vpack.c.b16 %v113, %v111
  %v178 = vunpack.c.l.b16 %v30
  %v179 = vunpack.c.l.b16 %v31
  %v180 = vunpack.c.l.b16 %v32
  %v181 = vunpack.c.l.b16 %v33
  %v182 = vunpack.c.l.b16 %v34
  %v183 = vunpack.c.l.b16 %v35
  %v184 = vunpack.c.l.b16 %v36
  %v185 = vunpack.c.l.b16 %v37
  %v186 = vunpack.c.l.b16 %v38
  %v187 = vunpack.c.l.b16 %v39
  %v188 = vunpack.c.l.b16 %v40
  %v189 = vunpack.c.l.b16 %v41
  %v190 = vunpack.c.l.b16 %v42
  %v191 = vunpack.c.l.b16 %v43
  %v192 = vunpack.c.l.b16 %v44
  %v193 = vunpack.c.l.b16 %v45
  %v194 = vunpack.c.l.b16 %v46
  %v195 = vunpack.c.l.b16 %v47
  %v196 = vunpack.c.l.b16 %v48
  %v197 = vunpack.c.l.b16 %v49
  %v198 = vunpack.c.l.b16 %v50
  %v199 = vunpack.c.l.b16 %v51
  %v200 = vunpack.c.l.b16 %v52
  %v201 = vunpack.c.l.b16 %v53
  %v202 = vunpack.c.l.b16 %v54
  %v203 = vunpack.c.l.b16 %v55
  %v204 = vunpack.c.l.b16 %v56
  %v205 = vunpack.c.l.b16 %v57
  %v206 = vunpack.c.l.b16 %v58
  %v207 = vunpack.c.l.b16 %v59
  %v208 = vunpack.c.l.b16 %v60
  %v209 = vunpack.c.l.b16 %v61
  %v210 = vpack.c.b16 %v179, %v178
  %v211 = vpack.c.b16 %v181, %v180
  %v212 = vpack.c.b16 %v183, %v182
  %v213 = vpack.c.b16 %v185, %v184
  %v214 = vpack.c.b16 %v187, %v186
  %v215 = vpack.c.b16 %v189, %v188
  %v216 = vpack.c.b16 %v191, %v190
  %v217 = vpack.c.b16 %v193, %v192
  %v218 = vpack.c.b16 %v195, %v194
  %v219 = vpack.c.b16 %v197, %v196
  %v220 = vpack.c.b16 %v199, %v198
  %v221 = vpack.c.b16 %v201, %v200
  %v222 = vpack.c.b16 %v203, %v202
  %v223 = vpack.c.b16 %v205, %v204
  %v224 = vpack.c.b16 %v207, %v206
  %v225 = vpack.c.b16 %v209, %v208
  %242 = vmatpush.bf16.msra.mxu0 %v217
  %243 = vmatpush.bf16.msra.mxu0 %v216
  %244 = vmatpush.bf16.msra.mxu0 %v215
  %245 = vmatpush.bf16.msra.mxu0 %v214
  %246 = vmatpush.bf16.msra.mxu0 %v213
  %247 = vmatpush.bf16.msra.mxu0 %v212
  %248 = vmatpush.bf16.msra.mxu0 %v211
  %249 = vmatpush.bf16.msra.mxu0 %v210
  %250 = vmatmul.bf16.gmra.mxu0 %v114
  %v251 = vpop.f32.mrf.mxu0
  %v252 = vadd.f32 %v64, %v251
  %v253 = vpop.f32.mrf.mxu0
  %v254 = vadd.f32 %v64, %v253
  %255 = vmatmul.bf16.gmra.mxu0 %v116
  %v256 = vpop.f32.mrf.mxu0
  %v257 = vadd.f32 %v64, %v256
  %v258 = vpop.f32.mrf.mxu0
  %v259 = vadd.f32 %v64, %v258
  %260 = vmatmul.bf16.gmra.mxu0 %v118
  %v261 = vpop.f32.mrf.mxu0
  %v262 = vadd.f32 %v64, %v261
  %v263 = vpop.f32.mrf.mxu0
  %v264 = vadd.f32 %v64, %v263
  %265 = vmatmul.bf16.gmra.mxu0 %v120
  %v266 = vpop.f32.mrf.mxu0
  %v267 = vadd.f32 %v64, %v266
  %v268 = vpop.f32.mrf.mxu0
  %v269 = vadd.f32 %v64, %v268
  %270 = vmatmul.bf16.gmra.mxu0 %v122
  %v271 = vpop.f32.mrf.mxu0
  %v272 = vadd.f32 %v64, %v271
  %v273 = vpop.f32.mrf.mxu0
  %v274 = vadd.f32 %v64, %v273
  %275 = vmatmul.bf16.gmra.mxu0 %v124
  %v276 = vpop.f32.mrf.mxu0
  %v277 = vadd.f32 %v64, %v276
  %v278 = vpop.f32.mrf.mxu0
  %v279 = vadd.f32 %v64, %v278
  %280 = vmatmul.bf16.gmra.mxu0 %v126
  %v281 = vpop.f32.mrf.mxu0
  %v282 = vadd.f32 %v64, %v281
  %v283 = vpop.f32.mrf.mxu0
  %v284 = vadd.f32 %v64, %v283
  %285 = vmatmul.bf16.gmra.mxu0 %v128
  %v286 = vpop.f32.mrf.mxu0
  %v287 = vadd.f32 %v64, %v286
  %v288 = vpop.f32.mrf.mxu0
  %v289 = vadd.f32 %v64, %v288
  %290 = vdwg.mxu0
  %291 = vmatpush.bf16.msra.mxu0 %v225
  %292 = vmatpush.bf16.msra.mxu0 %v224
  %293 = vmatpush.bf16.msra.mxu0 %v223
  %294 = vmatpush.bf16.msra.mxu0 %v222
  %295 = vmatpush.bf16.msra.mxu0 %v221
  %296 = vmatpush.bf16.msra.mxu0 %v220
  %297 = vmatpush.bf16.msra.mxu0 %v219
  %298 = vmatpush.bf16.msra.mxu0 %v218
  %299 = vmatmul.bf16.gmra.mxu0 %v115
  %v300 = vpop.f32.mrf.mxu0
  %v301 = vadd.f32 %v252, %v300
  %v302 = vpop.f32.mrf.mxu0
  %v303 = vadd.f32 %v254, %v302
  %304 = vmatmul.bf16.gmra.mxu0 %v117
  %v305 = vpop.f32.mrf.mxu0
  %v306 = vadd.f32 %v257, %v305
  %v307 = vpop.f32.mrf.mxu0
  %v308 = vadd.f32 %v259, %v307
  %309 = vmatmul.bf16.gmra.mxu0 %v119
  %v310 = vpop.f32.mrf.mxu0
  %v311 = vadd.f32 %v262, %v310
  %v312 = vpop.f32.mrf.mxu0
  %v313 = vadd.f32 %v264, %v312
  %314 = vmatmul.bf16.gmra.mxu0 %v121
  %v315 = vpop.f32.mrf.mxu0
  %v316 = vadd.f32 %v267, %v315
  %v317 = vpop.f32.mrf.mxu0
  %v318 = vadd.f32 %v269, %v317
  %319 = vmatmul.bf16.gmra.mxu0 %v123
  %v320 = vpop.f32.mrf.mxu0
  %v321 = vadd.f32 %v272, %v320
  %v322 = vpop.f32.mrf.mxu0
  %v323 = vadd.f32 %v274, %v322
  %324 = vmatmul.bf16.gmra.mxu0 %v125
  %v325 = vpop.f32.mrf.mxu0
  %v326 = vadd.f32 %v277, %v325
  %v327 = vpop.f32.mrf.mxu0
  %v328 = vadd.f32 %v279, %v327
  %329 = vmatmul.bf16.gmra.mxu0 %v127
  %v330 = vpop.f32.mrf.mxu0
  %v331 = vadd.f32 %v282, %v330
  %v332 = vpop.f32.mrf.mxu0
  %v333 = vadd.f32 %v284, %v332
  %334 = vmatmul.bf16.gmra.mxu0 %v129
  %v335 = vpop.f32.mrf.mxu0
  %v336 = vadd.f32 %v287, %v335
  %v337 = vpop.f32.mrf.mxu0
  %v338 = vadd.f32 %v289, %v337
  %339 = vdwg.mxu0
  %vm340 = vcmp.ge.f32.partialorder %v301, 0.0
  %vm341 = vcmp.ge.f32.partialorder %v303, 0.0
  %vm342 = vcmp.ge.f32.partialorder %v306, 0.0
  %vm343 = vcmp.ge.f32.partialorder %v308, 0.0
  %vm344 = vcmp.ge.f32.partialorder %v311, 0.0
  %vm345 = vcmp.ge.f32.partialorder %v313, 0.0
  %vm346 = vcmp.ge.f32.partialorder %v316, 0.0
  %vm347 = vcmp.ge.f32.partialorder %v318, 0.0
  %vm348 = vcmp.ge.f32.partialorder %v321, 0.0
  %vm349 = vcmp.ge.f32.partialorder %v323, 0.0
  %vm350 = vcmp.ge.f32.partialorder %v326, 0.0
  %vm351 = vcmp.ge.f32.partialorder %v328, 0.0
  %vm352 = vcmp.ge.f32.partialorder %v331, 0.0
  %vm353 = vcmp.ge.f32.partialorder %v333, 0.0
  %vm354 = vcmp.ge.f32.partialorder %v336, 0.0
  %vm355 = vcmp.ge.f32.partialorder %v338, 0.0
  %v356 = vmul.f32 %v301, 0.2
  %v357 = vmul.f32 %v303, 0.2
  %v358 = vmul.f32 %v306, 0.2
  %v359 = vmul.f32 %v308, 0.2
  %v360 = vmul.f32 %v311, 0.2
  %v361 = vmul.f32 %v313, 0.2
  %v362 = vmul.f32 %v316, 0.2
  %v363 = vmul.f32 %v318, 0.2
  %v364 = vmul.f32 %v321, 0.2
  %v365 = vmul.f32 %v323, 0.2
  %v366 = vmul.f32 %v326, 0.2
  %v367 = vmul.f32 %v328, 0.2
  %v368 = vmul.f32 %v331, 0.2
  %v369 = vmul.f32 %v333, 0.2
  %v370 = vmul.f32 %v336, 0.2
  %v371 = vmul.f32 %v338, 0.2
  %v372 = vsel %vm340, %v301, %v356
  %v373 = vsel %vm341, %v303, %v357
  %v374 = vsel %vm342, %v306, %v358
  %v375 = vsel %vm343, %v308, %v359
  %v376 = vsel %vm344, %v311, %v360
  %v377 = vsel %vm345, %v313, %v361
  %v378 = vsel %vm346, %v316, %v362
  %v379 = vsel %vm347, %v318, %v363
  %v380 = vsel %vm348, %v321, %v364
  %v381 = vsel %vm349, %v323, %v365
  %v382 = vsel %vm350, %v326, %v366
  %v383 = vsel %vm351, %v328, %v367
  %v384 = vsel %vm352, %v331, %v368
  %v385 = vsel %vm353, %v333, %v369
  %v386 = vsel %vm354, %v336, %v370
  %v387 = vsel %vm355, %v338, %v371
  %vm388 = vcmask 261120
  %389 = vst.msk [vmem:[%s3] sm:$0xff] %vm388, %v372
  %390 = vst.msk [vmem:[%s3 + $0x8] sm:$0xff] %vm388, %v373
  %391 = vst.msk [vmem:[%s3 + $0x10] sm:$0xff] %vm388, %v374
  %392 = vst.msk [vmem:[%s3 + $0x18] sm:$0xff] %vm388, %v375
  %393 = vst.msk [vmem:[%s3 + $0x20] sm:$0xff] %vm388, %v376
  %394 = vst.msk [vmem:[%s3 + $0x28] sm:$0xff] %vm388, %v377
  %395 = vst.msk [vmem:[%s3 + $0x30] sm:$0xff] %vm388, %v378
  %396 = vst.msk [vmem:[%s3 + $0x38] sm:$0xff] %vm388, %v379
  %397 = vst.msk [vmem:[%s3 + $0x40] sm:$0xff] %vm388, %v380
  %398 = vst.msk [vmem:[%s3 + $0x48] sm:$0xff] %vm388, %v381
  %399 = vst.msk [vmem:[%s3 + $0x50] sm:$0xff] %vm388, %v382
  %400 = vst.msk [vmem:[%s3 + $0x58] sm:$0xff] %vm388, %v383
  %401 = vst.msk [vmem:[%s3 + $0x60] sm:$0xff] %vm388, %v384
  %402 = vst.msk [vmem:[%s3 + $0x68] sm:$0xff] %vm388, %v385
  %403 = vst.msk [vmem:[%s3 + $0x70] sm:$0xff] %vm388, %v386
  %404 = vst.msk [vmem:[%s3 + $0x78] sm:$0xff] %vm388, %v387
  // Predicated region
  $region14: #{_lambda_.5} parent=0 // pred_check
    _
  $region15: #{_lambda_.5} parent=0 // pred_check_branch
    %406 = sbr.rel (0) target = $region17
  $region16: #{_lambda_.5} parent=0 // pred_region
    _
  $region17: #{_lambda_.5} parent=0 // pred_fallthru
    _
  // Predicated region
  $region18: #{_lambda_.5} parent=0 // pred_check
    _
  $region19: #{_lambda_.5} parent=0 // pred_check_branch
    %408 = sbr.rel (0) target = $region21
  $region20: #{_lambda_.5} parent=0 // pred_region
    _
  $region21: #{_lambda_.5} parent=0 // pred_fallthru
    _

// kernel: _lambda_.6
$region0: #{_lambda_.6}
  #allocation0 [shape = 'u32[]', space=smem, size = 0x4, offset = 0x4, fixed_abs, tag = 'smem constant byte address 0x4 - core index']
  #allocation1 [shape = 'u32[72,128]{1,0:T(1,128)}', space=vmem, size = 0x9000, scoped, tag = 'internal scratch']
  %s0 = inlined_call_operand.vmem [shape: bf16[32,512], index: 0, kind: input, shape index: {}]
  %s1 = inlined_call_operand.vmem [shape: bf16[512,64], index: 1, kind: input, shape index: {}]
  %s2 = inlined_call_operand.vmem [shape: f32[1,64], index: 2, kind: input, shape index: {}]
  %s3 = inlined_call_operand.vmem [shape: f32[32,64], index: 3, kind: output, shape index: {}]
  %s4 = sld [smem:[#allocation0]]
  $region22: #{_lambda_.6} parent=0
    _
  %s6 = ssub.s32 1, %s4
  %s7 = scalar_select 0, %s6, %s4
  // Predicated region
  $region2: #{_lambda_.6} parent=0 // pred_check
    _
  $region3: #{_lambda_.6} parent=0 // pred_check_branch
    %9 = sbr.rel (0) target = $region5
  $region4: #{_lambda_.6} parent=0 // pred_region
    _
  $region5: #{_lambda_.6} parent=0 // pred_fallthru
    _
  // Predicated region
  $region6: #{_lambda_.6} parent=0 // pred_check
    _
  $region7: #{_lambda_.6} parent=0 // pred_check_branch
    %11 = sbr.rel (0) target = $region9
  $region8: #{_lambda_.6} parent=0 // pred_region
    _
  $region9: #{_lambda_.6} parent=0 // pred_fallthru
    _
  // Predicated region
  $region10: #{_lambda_.6} parent=0 // pred_check
    _
  $region11: #{_lambda_.6} parent=0 // pred_check_branch
    %13 = sbr.rel (0) target = $region13
  $region12: #{_lambda_.6} parent=0 // pred_region
    _
  $region13: #{_lambda_.6} parent=0 // pred_fallthru
    _
  %v14 = vld [vmem:[%s0] sm:$0xff]
  %v15 = vld [vmem:[%s0 + $0x8] sm:$0xff]
  %v16 = vld [vmem:[%s0 + $0x10] sm:$0xff]
  %v17 = vld [vmem:[%s0 + $0x18] sm:$0xff]
  %v18 = vld [vmem:[%s0 + $0x20] sm:$0xff]
  %v19 = vld [vmem:[%s0 + $0x28] sm:$0xff]
  %v20 = vld [vmem:[%s0 + $0x30] sm:$0xff]
  %v21 = vld [vmem:[%s0 + $0x38] sm:$0xff]
  %v22 = vld [vmem:[%s1] sm:$0xf]
  %v23 = vld [vmem:[%s1 + $0x4] sm:$0xf]
  %v24 = vld [vmem:[%s1 + $0x8] sm:$0xf]
  %v25 = vld [vmem:[%s1 + $0xc] sm:$0xf]
  %v26 = vld [vmem:[%s1 + $0x10] sm:$0xf]
  %v27 = vld [vmem:[%s1 + $0x14] sm:$0xf]
  %v28 = vld [vmem:[%s1 + $0x18] sm:$0xf]
  %v29 = vld [vmem:[%s1 + $0x1c] sm:$0xf]
  %v30 = vld [vmem:[%s1 + $0x20] sm:$0xf]
  %v31 = vld [vmem:[%s1 + $0x24] sm:$0xf]
  %v32 = vld [vmem:[%s1 + $0x28] sm:$0xf]
  %v33 = vld [vmem:[%s1 + $0x2c] sm:$0xf]
  %v34 = vld [vmem:[%s1 + $0x30] sm:$0xf]
  %v35 = vld [vmem:[%s1 + $0x34] sm:$0xf]
  %v36 = vld [vmem:[%s1 + $0x38] sm:$0xf]
  %v37 = vld [vmem:[%s1 + $0x3c] sm:$0xf]
  %v38 = vld [vmem:[%s1 + $0x40] sm:$0xf]
  %v39 = vld [vmem:[%s1 + $0x44] sm:$0xf]
  %v40 = vld [vmem:[%s1 + $0x48] sm:$0xf]
  %v41 = vld [vmem:[%s1 + $0x4c] sm:$0xf]
  %v42 = vld [vmem:[%s1 + $0x50] sm:$0xf]
  %v43 = vld [vmem:[%s1 + $0x54] sm:$0xf]
  %v44 = vld [vmem:[%s1 + $0x58] sm:$0xf]
  %v45 = vld [vmem:[%s1 + $0x5c] sm:$0xf]
  %v46 = vld [vmem:[%s1 + $0x60] sm:$0xf]
  %v47 = vld [vmem:[%s1 + $0x64] sm:$0xf]
  %v48 = vld [vmem:[%s1 + $0x68] sm:$0xf]
  %v49 = vld [vmem:[%s1 + $0x6c] sm:$0xf]
  %v50 = vld [vmem:[%s1 + $0x70] sm:$0xf]
  %v51 = vld [vmem:[%s1 + $0x74] sm:$0xf]
  %v52 = vld [vmem:[%s1 + $0x78] sm:$0xf]
  %v53 = vld [vmem:[%s1 + $0x7c] sm:$0xf]
  %v54 = vld [vmem:[%s1 + $0x80] sm:$0xf]
  %v55 = vld [vmem:[%s1 + $0x84] sm:$0xf]
  %v56 = vld [vmem:[%s1 + $0x88] sm:$0xf]
  %v57 = vld [vmem:[%s1 + $0x8c] sm:$0xf]
  %v58 = vld [vmem:[%s1 + $0x90] sm:$0xf]
  %v59 = vld [vmem:[%s1 + $0x94] sm:$0xf]
  %v60 = vld [vmem:[%s1 + $0x98] sm:$0xf]
  %v61 = vld [vmem:[%s1 + $0x9c] sm:$0xf]
  %v62 = vld [vmem:[%s1 + $0xa0] sm:$0xf]
  %v63 = vld [vmem:[%s1 + $0xa4] sm:$0xf]
  %v64 = vld [vmem:[%s1 + $0xa8] sm:$0xf]
  %v65 = vld [vmem:[%s1 + $0xac] sm:$0xf]
  %v66 = vld [vmem:[%s1 + $0xb0] sm:$0xf]
  %v67 = vld [vmem:[%s1 + $0xb4] sm:$0xf]
  %v68 = vld [vmem:[%s1 + $0xb8] sm:$0xf]
  %v69 = vld [vmem:[%s1 + $0xbc] sm:$0xf]
  %v70 = vld [vmem:[%s1 + $0xc0] sm:$0xf]
  %v71 = vld [vmem:[%s1 + $0xc4] sm:$0xf]
  %v72 = vld [vmem:[%s1 + $0xc8] sm:$0xf]
  %v73 = vld [vmem:[%s1 + $0xcc] sm:$0xf]
  %v74 = vld [vmem:[%s1 + $0xd0] sm:$0xf]
  %v75 = vld [vmem:[%s1 + $0xd4] sm:$0xf]
  %v76 = vld [vmem:[%s1 + $0xd8] sm:$0xf]
  %v77 = vld [vmem:[%s1 + $0xdc] sm:$0xf]
  %v78 = vld [vmem:[%s1 + $0xe0] sm:$0xf]
  %v79 = vld [vmem:[%s1 + $0xe4] sm:$0xf]
  %v80 = vld [vmem:[%s1 + $0xe8] sm:$0xf]
  %v81 = vld [vmem:[%s1 + $0xec] sm:$0xf]
  %v82 = vld [vmem:[%s1 + $0xf0] sm:$0xf]
  %v83 = vld [vmem:[%s1 + $0xf4] sm:$0xf]
  %v84 = vld [vmem:[%s1 + $0xf8] sm:$0xf]
  %v85 = vld [vmem:[%s1 + $0xfc] sm:$0xf]
  %v86 = vld [vmem:[%s2] sm:$0x1]
  %v88 = vperm.slane %v86, 0
  %v98 = vunpack.c.l.b16 %v14
  %v99 = vunpack.c.h.b16 %v14
  %v100 = vunpack.c.l.b16 %v15
  %v101 = vunpack.c.h.b16 %v15
  %v102 = vunpack.c.l.b16 %v16
  %v103 = vunpack.c.h.b16 %v16
  %v104 = vunpack.c.l.b16 %v17
  %v105 = vunpack.c.h.b16 %v17
  %v106 = vunpack.c.l.b16 %v18
  %v107 = vunpack.c.h.b16 %v18
  %v108 = vunpack.c.l.b16 %v19
  %v109 = vunpack.c.h.b16 %v19
  %v110 = vunpack.c.l.b16 %v20
  %v111 = vunpack.c.h.b16 %v20
  %v112 = vunpack.c.l.b16 %v21
  %v113 = vunpack.c.h.b16 %v21
  %v114 = vpack.c.b16 %v102, %v98
  %v115 = vpack.c.b16 %v103, %v99
  %v116 = vpack.c.b16 %v104, %v100
  %v117 = vpack.c.b16 %v105, %v101
  %v118 = vpack.c.b16 %v110, %v106
  %v119 = vpack.c.b16 %v111, %v107
  %v120 = vpack.c.b16 %v112, %v108
  %v121 = vpack.c.b16 %v113, %v109
  %v194 = vunpack.c.l.b16 %v22
  %v195 = vunpack.c.l.b16 %v23
  %v196 = vunpack.c.l.b16 %v24
  %v197 = vunpack.c.l.b16 %v25
  %v198 = vunpack.c.l.b16 %v26
  %v199 = vunpack.c.l.b16 %v27
  %v200 = vunpack.c.l.b16 %v28
  %v201 = vunpack.c.l.b16 %v29
  %v202 = vunpack.c.l.b16 %v30
  %v203 = vunpack.c.l.b16 %v31
  %v204 = vunpack.c.l.b16 %v32
  %v205 = vunpack.c.l.b16 %v33
  %v206 = vunpack.c.l.b16 %v34
  %v207 = vunpack.c.l.b16 %v35
  %v208 = vunpack.c.l.b16 %v36
  %v209 = vunpack.c.l.b16 %v37
  %v210 = vunpack.c.l.b16 %v38
  %v211 = vunpack.c.l.b16 %v39
  %v212 = vunpack.c.l.b16 %v40
  %v213 = vunpack.c.l.b16 %v41
  %v214 = vunpack.c.l.b16 %v42
  %v215 = vunpack.c.l.b16 %v43
  %v216 = vunpack.c.l.b16 %v44
  %v217 = vunpack.c.l.b16 %v45
  %v218 = vunpack.c.l.b16 %v46
  %v219 = vunpack.c.l.b16 %v47
  %v220 = vunpack.c.l.b16 %v48
  %v221 = vunpack.c.l.b16 %v49
  %v222 = vunpack.c.l.b16 %v50
  %v223 = vunpack.c.l.b16 %v51
  %v224 = vunpack.c.l.b16 %v52
  %v225 = vunpack.c.l.b16 %v53
  %v226 = vunpack.c.l.b16 %v54
  %v227 = vunpack.c.l.b16 %v55
  %v228 = vunpack.c.l.b16 %v56
  %v229 = vunpack.c.l.b16 %v57
  %v230 = vunpack.c.l.b16 %v58
  %v231 = vunpack.c.l.b16 %v59
  %v232 = vunpack.c.l.b16 %v60
  %v233 = vunpack.c.l.b16 %v61
  %v234 = vunpack.c.l.b16 %v62
  %v235 = vunpack.c.l.b16 %v63
  %v236 = vunpack.c.l.b16 %v64
  %v237 = vunpack.c.l.b16 %v65
  %v238 = vunpack.c.l.b16 %v66
  %v239 = vunpack.c.l.b16 %v67
  %v240 = vunpack.c.l.b16 %v68
  %v241 = vunpack.c.l.b16 %v69
  %v242 = vunpack.c.l.b16 %v70
  %v243 = vunpack.c.l.b16 %v71
  %v244 = vunpack.c.l.b16 %v72
  %v245 = vunpack.c.l.b16 %v73
  %v246 = vunpack.c.l.b16 %v74
  %v247 = vunpack.c.l.b16 %v75
  %v248 = vunpack.c.l.b16 %v76
  %v249 = vunpack.c.l.b16 %v77
  %v250 = vunpack.c.l.b16 %v78
  %v251 = vunpack.c.l.b16 %v79
  %v252 = vunpack.c.l.b16 %v80
  %v253 = vunpack.c.l.b16 %v81
  %v254 = vunpack.c.l.b16 %v82
  %v255 = vunpack.c.l.b16 %v83
  %v256 = vunpack.c.l.b16 %v84
  %v257 = vunpack.c.l.b16 %v85
  %v258 = vpack.c.b16 %v195, %v194
  %v259 = vpack.c.b16 %v197, %v196
  %v260 = vpack.c.b16 %v199, %v198
  %v261 = vpack.c.b16 %v201, %v200
  %v262 = vpack.c.b16 %v203, %v202
  %v263 = vpack.c.b16 %v205, %v204
  %v264 = vpack.c.b16 %v207, %v206
  %v265 = vpack.c.b16 %v209, %v208
  %v266 = vpack.c.b16 %v211, %v210
  %v267 = vpack.c.b16 %v213, %v212
  %v268 = vpack.c.b16 %v215, %v214
  %v269 = vpack.c.b16 %v217, %v216
  %v270 = vpack.c.b16 %v219, %v218
  %v271 = vpack.c.b16 %v221, %v220
  %v272 = vpack.c.b16 %v223, %v222
  %v273 = vpack.c.b16 %v225, %v224
  %v274 = vpack.c.b16 %v227, %v226
  %v275 = vpack.c.b16 %v229, %v228
  %v276 = vpack.c.b16 %v231, %v230
  %v277 = vpack.c.b16 %v233, %v232
  %v278 = vpack.c.b16 %v235, %v234
  %v279 = vpack.c.b16 %v237, %v236
  %v280 = vpack.c.b16 %v239, %v238
  %v281 = vpack.c.b16 %v241, %v240
  %v282 = vpack.c.b16 %v243, %v242
  %v283 = vpack.c.b16 %v245, %v244
  %v284 = vpack.c.b16 %v247, %v246
  %v285 = vpack.c.b16 %v249, %v248
  %v286 = vpack.c.b16 %v251, %v250
  %v287 = vpack.c.b16 %v253, %v252
  %v288 = vpack.c.b16 %v255, %v254
  %v289 = vpack.c.b16 %v257, %v256
  %322 = vmatpush.bf16.msra.mxu0 %v265
  %323 = vmatpush.bf16.msra.mxu0 %v264
  %324 = vmatpush.bf16.msra.mxu0 %v263
  %325 = vmatpush.bf16.msra.mxu0 %v262
  %326 = vmatpush.bf16.msra.mxu0 %v261
  %327 = vmatpush.bf16.msra.mxu0 %v260
  %328 = vmatpush.bf16.msra.mxu0 %v259
  %329 = vmatpush.bf16.msra.mxu0 %v258
  %330 = vmatmul.bf16.gmra.mxu0 %v114
  %v331 = vpop.f32.mrf.mxu0
  %v332 = vadd.f32 %v88, %v331
  %v333 = vpop.f32.mrf.mxu0
  %v334 = vadd.f32 %v88, %v333
  %335 = vmatmul.bf16.gmra.mxu0 %v118
  %v336 = vpop.f32.mrf.mxu0
  %v337 = vadd.f32 %v88, %v336
  %v338 = vpop.f32.mrf.mxu0
  %v339 = vadd.f32 %v88, %v338
  %340 = vdwg.mxu0
  %341 = vmatpush.bf16.msra.mxu0 %v273
  %342 = vmatpush.bf16.msra.mxu0 %v272
  %343 = vmatpush.bf16.msra.mxu0 %v271
  %344 = vmatpush.bf16.msra.mxu0 %v270
  %345 = vmatpush.bf16.msra.mxu0 %v269
  %346 = vmatpush.bf16.msra.mxu0 %v268
  %347 = vmatpush.bf16.msra.mxu0 %v267
  %348 = vmatpush.bf16.msra.mxu0 %v266
  %349 = vmatmul.bf16.gmra.mxu0 %v115
  %v350 = vpop.f32.mrf.mxu0
  %v351 = vadd.f32 %v332, %v350
  %v352 = vpop.f32.mrf.mxu0
  %v353 = vadd.f32 %v334, %v352
  %354 = vmatmul.bf16.gmra.mxu0 %v119
  %v355 = vpop.f32.mrf.mxu0
  %v356 = vadd.f32 %v337, %v355
  %v357 = vpop.f32.mrf.mxu0
  %v358 = vadd.f32 %v339, %v357
  %359 = vdwg.mxu0
  %360 = vmatpush.bf16.msra.mxu0 %v281
  %361 = vmatpush.bf16.msra.mxu0 %v280
  %362 = vmatpush.bf16.msra.mxu0 %v279
  %363 = vmatpush.bf16.msra.mxu0 %v278
  %364 = vmatpush.bf16.msra.mxu0 %v277
  %365 = vmatpush.bf16.msra.mxu0 %v276
  %366 = vmatpush.bf16.msra.mxu0 %v275
  %367 = vmatpush.bf16.msra.mxu0 %v274
  %368 = vmatmul.bf16.gmra.mxu0 %v116
  %v369 = vpop.f32.mrf.mxu0
  %v370 = vadd.f32 %v351, %v369
  %v371 = vpop.f32.mrf.mxu0
  %v372 = vadd.f32 %v353, %v371
  %373 = vmatmul.bf16.gmra.mxu0 %v120
  %v374 = vpop.f32.mrf.mxu0
  %v375 = vadd.f32 %v356, %v374
  %v376 = vpop.f32.mrf.mxu0
  %v377 = vadd.f32 %v358, %v376
  %378 = vdwg.mxu0
  %379 = vmatpush.bf16.msra.mxu0 %v289
  %380 = vmatpush.bf16.msra.mxu0 %v288
  %381 = vmatpush.bf16.msra.mxu0 %v287
  %382 = vmatpush.bf16.msra.mxu0 %v286
  %383 = vmatpush.bf16.msra.mxu0 %v285
  %384 = vmatpush.bf16.msra.mxu0 %v284
  %385 = vmatpush.bf16.msra.mxu0 %v283
  %386 = vmatpush.bf16.msra.mxu0 %v282
  %387 = vmatmul.bf16.gmra.mxu0 %v117
  %v388 = vpop.f32.mrf.mxu0
  %v389 = vadd.f32 %v370, %v388
  %v390 = vpop.f32.mrf.mxu0
  %v391 = vadd.f32 %v372, %v390
  %392 = vmatmul.bf16.gmra.mxu0 %v121
  %v393 = vpop.f32.mrf.mxu0
  %v394 = vadd.f32 %v375, %v393
  %v395 = vpop.f32.mrf.mxu0
  %v396 = vadd.f32 %v377, %v395
  %397 = vdwg.mxu0
  %vm398 = vcmp.ge.f32.partialorder %v389, 0.0
  %vm399 = vcmp.ge.f32.partialorder %v391, 0.0
  %vm400 = vcmp.ge.f32.partialorder %v394, 0.0
  %vm401 = vcmp.ge.f32.partialorder %v396, 0.0
  %v402 = vmul.f32 %v389, 0.2
  %v403 = vmul.f32 %v391, 0.2
  %v404 = vmul.f32 %v394, 0.2
  %v405 = vmul.f32 %v396, 0.2
  %v406 = vsel %vm398, %v389, %v402
  %v407 = vsel %vm399, %v391, %v403
  %v408 = vsel %vm400, %v394, %v404
  %v409 = vsel %vm401, %v396, %v405
  %vm410 = vcmask 523264
  %411 = vst.msk [vmem:[%s3] sm:$0xff] %vm410, %v406
  %412 = vst.msk [vmem:[%s3 + $0x8] sm:$0xff] %vm410, %v407
  %413 = vst.msk [vmem:[%s3 + $0x10] sm:$0xff] %vm410, %v408
  %414 = vst.msk [vmem:[%s3 + $0x18] sm:$0xff] %vm410, %v409
  // Predicated region
  $region14: #{_lambda_.6} parent=0 // pred_check
    _
  $region15: #{_lambda_.6} parent=0 // pred_check_branch
    %416 = sbr.rel (0) target = $region17
  $region16: #{_lambda_.6} parent=0 // pred_region
    _
  $region17: #{_lambda_.6} parent=0 // pred_fallthru
    _
  // Predicated region
  $region18: #{_lambda_.6} parent=0 // pred_check
    _
  $region19: #{_lambda_.6} parent=0 // pred_check_branch
    %418 = sbr.rel (0) target = $region21
  $region20: #{_lambda_.6} parent=0 // pred_region
    _
  $region21: #{_lambda_.6} parent=0 // pred_fallthru
    _

// kernel: _lambda_.7
$region0: #{_lambda_.7}
  #allocation0 [shape = 'u32[]', space=smem, size = 0x4, offset = 0x4, fixed_abs, tag = 'smem constant byte address 0x4 - core index']
  #allocation1 [shape = 'u32[72,128]{1,0:T(1,128)}', space=vmem, size = 0x9000, scoped, tag = 'internal scratch']
  #allocation2 [shape = 'f32[1,1]{1,0:T(1,128)S(1)}', space=vmem, size = 0x200, scoped, tag = 'scoped memory for _lambda_.7']
  %s0 = inlined_call_operand.vmem [shape: f32[2,1024], index: 0, kind: input, shape index: {}]
  %s1 = inlined_call_operand.vmem [shape: f32[1024,128], index: 1, kind: input, shape index: {}]
  %s2 = inlined_call_operand.vmem [shape: f32[1,128], index: 2, kind: input, shape index: {}]
  %s3 = inlined_call_operand.vmem [shape: f32[128,64], index: 3, kind: input, shape index: {}]
  %s4 = inlined_call_operand.vmem [shape: f32[1,64], index: 4, kind: input, shape index: {}]
  %s5 = inlined_call_operand.vmem [shape: f32[2,64], index: 5, kind: input, shape index: {}]
  %s6 = inlined_call_operand.<no memory space> [shape: f32[1,1], index: 6, kind: input, shape index: {}]
  %s7 = inlined_call_operand.vmem [shape: f32[2,1], index: 7, kind: output, shape index: {}]
  %s8 = sld [smem:[#allocation0]]
  $region38: #{_lambda_.7} parent=0
    _
  %s10 = ssub.s32 1, %s8
  %s11 = scalar_select 0, %s10, %s8
  %v12 = vstv %s6
  %13 = vst [vmem:[#allocation2] sm:$0x1] %v12
  // Predicated region
  $region2: #{_lambda_.7} parent=0 // pred_check
    _
  $region3: #{_lambda_.7} parent=0 // pred_check_branch
    %15 = sbr.rel (0) target = $region5
  $region4: #{_lambda_.7} parent=0 // pred_region
    _
  $region5: #{_lambda_.7} parent=0 // pred_fallthru
    _
  // Predicated region
  $region6: #{_lambda_.7} parent=0 // pred_check
    _
  $region7: #{_lambda_.7} parent=0 // pred_check_branch
    %17 = sbr.rel (0) target = $region9
  $region8: #{_lambda_.7} parent=0 // pred_region
    _
  $region9: #{_lambda_.7} parent=0 // pred_fallthru
    _
  // Predicated region
  $region10: #{_lambda_.7} parent=0 // pred_check
    _
  $region11: #{_lambda_.7} parent=0 // pred_check_branch
    %19 = sbr.rel (0) target = $region13
  $region12: #{_lambda_.7} parent=0 // pred_region
    _
  $region13: #{_lambda_.7} parent=0 // pred_fallthru
    _
  // Predicated region
  $region14: #{_lambda_.7} parent=0 // pred_check
    _
  $region15: #{_lambda_.7} parent=0 // pred_check_branch
    %21 = sbr.rel (0) target = $region17
  $region16: #{_lambda_.7} parent=0 // pred_region
    _
  $region17: #{_lambda_.7} parent=0 // pred_fallthru
    _
  // Predicated region
  $region18: #{_lambda_.7} parent=0 // pred_check
    _
  $region19: #{_lambda_.7} parent=0 // pred_check_branch
    %23 = sbr.rel (0) target = $region21
  $region20: #{_lambda_.7} parent=0 // pred_region
    _
  $region21: #{_lambda_.7} parent=0 // pred_fallthru
    _
  // Predicated region
  $region22: #{_lambda_.7} parent=0 // pred_check
    _
  $region23: #{_lambda_.7} parent=0 // pred_check_branch
    %25 = sbr.rel (0) target = $region25
  $region24: #{_lambda_.7} parent=0 // pred_region
    _
  $region25: #{_lambda_.7} parent=0 // pred_fallthru
    _
  // Predicated region
  $region26: #{_lambda_.7} parent=0 // pred_check
    _
  $region27: #{_lambda_.7} parent=0 // pred_check_branch
    %27 = sbr.rel (0) target = $region29
  $region28: #{_lambda_.7} parent=0 // pred_region
    _
  $region29: #{_lambda_.7} parent=0 // pred_fallthru
    _
  %v28 = vld [vmem:[%s0] sm:$0xff]
  %v29 = vld [vmem:[%s0 + $0x8] sm:$0xff]
  %v30 = vld [vmem:[%s1] sm:$0xff]
  %v31 = vld [vmem:[%s1 + $0x8] sm:$0xff]
  %v32 = vld [vmem:[%s1 + $0x10] sm:$0xff]
  %v33 = vld [vmem:[%s1 + $0x18] sm:$0xff]
  %v34 = vld [vmem:[%s1 + $0x20] sm:$0xff]
  %v35 = vld [vmem:[%s1 + $0x28] sm:$0xff]
  %v36 = vld [vmem:[%s1 + $0x30] sm:$0xff]
  %v37 = vld [vmem:[%s1 + $0x38] sm:$0xff]
  %v38 = vld [vmem:[%s1 + $0x40] sm:$0xff]
  %v39 = vld [vmem:[%s1 + $0x48] sm:$0xff]
  %v40 = vld [vmem:[%s1 + $0x50] sm:$0xff]
  %v41 = vld [vmem:[%s1 + $0x58] sm:$0xff]
  %v42 = vld [vmem:[%s1 + $0x60] sm:$0xff]
  %v43 = vld [vmem:[%s1 + $0x68] sm:$0xff]
  %v44 = vld [vmem:[%s1 + $0x70] sm:$0xff]
  %v45 = vld [vmem:[%s1 + $0x78] sm:$0xff]
  %v46 = vld [vmem:[%s1 + $0x80] sm:$0xff]
  %v47 = vld [vmem:[%s1 + $0x88] sm:$0xff]
  %v48 = vld [vmem:[%s1 + $0x90] sm:$0xff]
  %v49 = vld [vmem:[%s1 + $0x98] sm:$0xff]
  %v50 = vld [vmem:[%s1 + $0xa0] sm:$0xff]
  %v51 = vld [vmem:[%s1 + $0xa8] sm:$0xff]
  %v52 = vld [vmem:[%s1 + $0xb0] sm:$0xff]
  %v53 = vld [vmem:[%s1 + $0xb8] sm:$0xff]
  %v54 = vld [vmem:[%s1 + $0xc0] sm:$0xff]
  %v55 = vld [vmem:[%s1 + $0xc8] sm:$0xff]
  %v56 = vld [vmem:[%s1 + $0xd0] sm:$0xff]
  %v57 = vld [vmem:[%s1 + $0xd8] sm:$0xff]
  %v58 = vld [vmem:[%s1 + $0xe0] sm:$0xff]
  %v59 = vld [vmem:[%s1 + $0xe8] sm:$0xff]
  %v60 = vld [vmem:[%s1 + $0xf0] sm:$0xff]
  %v61 = vld [vmem:[%s1 + $0xf8] sm:$0xff]
  %v62 = vld [vmem:[%s1 + $0x100] sm:$0xff]
  %v63 = vld [vmem:[%s1 + $0x108] sm:$0xff]
  %v64 = vld [vmem:[%s1 + $0x110] sm:$0xff]
  %v65 = vld [vmem:[%s1 + $0x118] sm:$0xff]
  %v66 = vld [vmem:[%s1 + $0x120] sm:$0xff]
  %v67 = vld [vmem:[%s1 + $0x128] sm:$0xff]
  %v68 = vld [vmem:[%s1 + $0x130] sm:$0xff]
  %v69 = vld [vmem:[%s1 + $0x138] sm:$0xff]
  %v70 = vld [vmem:[%s1 + $0x140] sm:$0xff]
  %v71 = vld [vmem:[%s1 + $0x148] sm:$0xff]
  %v72 = vld [vmem:[%s1 + $0x150] sm:$0xff]
  %v73 = vld [vmem:[%s1 + $0x158] sm:$0xff]
  %v74 = vld [vmem:[%s1 + $0x160] sm:$0xff]
  %v75 = vld [vmem:[%s1 + $0x168] sm:$0xff]
  %v76 = vld [vmem:[%s1 + $0x170] sm:$0xff]
  %v77 = vld [vmem:[%s1 + $0x178] sm:$0xff]
  %v78 = vld [vmem:[%s1 + $0x180] sm:$0xff]
  %v79 = vld [vmem:[%s1 + $0x188] sm:$0xff]
  %v80 = vld [vmem:[%s1 + $0x190] sm:$0xff]
  %v81 = vld [vmem:[%s1 + $0x198] sm:$0xff]
  %v82 = vld [vmem:[%s1 + $0x1a0] sm:$0xff]
  %v83 = vld [vmem:[%s1 + $0x1a8] sm:$0xff]
  %v84 = vld [vmem:[%s1 + $0x1b0] sm:$0xff]
  %v85 = vld [vmem:[%s1 + $0x1b8] sm:$0xff]
  %v86 = vld [vmem:[%s1 + $0x1c0] sm:$0xff]
  %v87 = vld [vmem:[%s1 + $0x1c8] sm:$0xff]
  %v88 = vld [vmem:[%s1 + $0x1d0] sm:$0xff]
  %v89 = vld [vmem:[%s1 + $0x1d8] sm:$0xff]
  %v90 = vld [vmem:[%s1 + $0x1e0] sm:$0xff]
  %v91 = vld [vmem:[%s1 + $0x1e8] sm:$0xff]
  %v92 = vld [vmem:[%s1 + $0x1f0] sm:$0xff]
  %v93 = vld [vmem:[%s1 + $0x1f8] sm:$0xff]
  %v94 = vld [vmem:[%s1 + $0x200] sm:$0xff]
  %v95 = vld [vmem:[%s1 + $0x208] sm:$0xff]
  %v96 = vld [vmem:[%s1 + $0x210] sm:$0xff]
  %v97 = vld [vmem:[%s1 + $0x218] sm:$0xff]
  %v98 = vld [vmem:[%s1 + $0x220] sm:$0xff]
  %v99 = vld [vmem:[%s1 + $0x228] sm:$0xff]
  %v100 = vld [vmem:[%s1 + $0x230] sm:$0xff]
  %v101 = vld [vmem:[%s1 + $0x238] sm:$0xff]
  %v102 = vld [vmem:[%s1 + $0x240] sm:$0xff]
  %v103 = vld [vmem:[%s1 + $0x248] sm:$0xff]
  %v104 = vld [vmem:[%s1 + $0x250] sm:$0xff]
  %v105 = vld [vmem:[%s1 + $0x258] sm:$0xff]
  %v106 = vld [vmem:[%s1 + $0x260] sm:$0xff]
  %v107 = vld [vmem:[%s1 + $0x268] sm:$0xff]
  %v108 = vld [vmem:[%s1 + $0x270] sm:$0xff]
  %v109 = vld [vmem:[%s1 + $0x278] sm:$0xff]
  %v110 = vld [vmem:[%s1 + $0x280] sm:$0xff]
  %v111 = vld [vmem:[%s1 + $0x288] sm:$0xff]
  %v112 = vld [vmem:[%s1 + $0x290] sm:$0xff]
  %v113 = vld [vmem:[%s1 + $0x298] sm:$0xff]
  %v114 = vld [vmem:[%s1 + $0x2a0] sm:$0xff]
  %v115 = vld [vmem:[%s1 + $0x2a8] sm:$0xff]
  %v116 = vld [vmem:[%s1 + $0x2b0] sm:$0xff]
  %v117 = vld [vmem:[%s1 + $0x2b8] sm:$0xff]
  %v118 = vld [vmem:[%s1 + $0x2c0] sm:$0xff]
  %v119 = vld [vmem:[%s1 + $0x2c8] sm:$0xff]
  %v120 = vld [vmem:[%s1 + $0x2d0] sm:$0xff]
  %v121 = vld [vmem:[%s1 + $0x2d8] sm:$0xff]
  %v122 = vld [vmem:[%s1 + $0x2e0] sm:$0xff]
  %v123 = vld [vmem:[%s1 + $0x2e8] sm:$0xff]
  %v124 = vld [vmem:[%s1 + $0x2f0] sm:$0xff]
  %v125 = vld [vmem:[%s1 + $0x2f8] sm:$0xff]
  %v126 = vld [vmem:[%s1 + $0x300] sm:$0xff]
  %v127 = vld [vmem:[%s1 + $0x308] sm:$0xff]
  %v128 = vld [vmem:[%s1 + $0x310] sm:$0xff]
  %v129 = vld [vmem:[%s1 + $0x318] sm:$0xff]
  %v130 = vld [vmem:[%s1 + $0x320] sm:$0xff]
  %v131 = vld [vmem:[%s1 + $0x328] sm:$0xff]
  %v132 = vld [vmem:[%s1 + $0x330] sm:$0xff]
  %v133 = vld [vmem:[%s1 + $0x338] sm:$0xff]
  %v134 = vld [vmem:[%s1 + $0x340] sm:$0xff]
  %v135 = vld [vmem:[%s1 + $0x348] sm:$0xff]
  %v136 = vld [vmem:[%s1 + $0x350] sm:$0xff]
  %v137 = vld [vmem:[%s1 + $0x358] sm:$0xff]
  %v138 = vld [vmem:[%s1 + $0x360] sm:$0xff]
  %v139 = vld [vmem:[%s1 + $0x368] sm:$0xff]
  %v140 = vld [vmem:[%s1 + $0x370] sm:$0xff]
  %v141 = vld [vmem:[%s1 + $0x378] sm:$0xff]
  %v142 = vld [vmem:[%s1 + $0x380] sm:$0xff]
  %v143 = vld [vmem:[%s1 + $0x388] sm:$0xff]
  %v144 = vld [vmem:[%s1 + $0x390] sm:$0xff]
  %v145 = vld [vmem:[%s1 + $0x398] sm:$0xff]
  %v146 = vld [vmem:[%s1 + $0x3a0] sm:$0xff]
  %v147 = vld [vmem:[%s1 + $0x3a8] sm:$0xff]
  %v148 = vld [vmem:[%s1 + $0x3b0] sm:$0xff]
  %v149 = vld [vmem:[%s1 + $0x3b8] sm:$0xff]
  %v150 = vld [vmem:[%s1 + $0x3c0] sm:$0xff]
  %v151 = vld [vmem:[%s1 + $0x3c8] sm:$0xff]
  %v152 = vld [vmem:[%s1 + $0x3d0] sm:$0xff]
  %v153 = vld [vmem:[%s1 + $0x3d8] sm:$0xff]
  %v154 = vld [vmem:[%s1 + $0x3e0] sm:$0xff]
  %v155 = vld [vmem:[%s1 + $0x3e8] sm:$0xff]
  %v156 = vld [vmem:[%s1 + $0x3f0] sm:$0xff]
  %v157 = vld [vmem:[%s1 + $0x3f8] sm:$0xff]
  %v158 = vld [vmem:[%s2] sm:$0x1]
  %v160 = vperm.slane %v158, 0
  %164 = vst [vmem:[#allocation1] ss:$4 sm:$0xff] %v28
  %s165 = scalar_lea.vmem [#allocation1], 32
  %166 = vst [vmem:[%s165] ss:$4 sm:$0xff] %v29
  %v167 = vld.sshfl [vmem:[#allocation1] sm:$0xff pattern:$0x73625140]
  %v168 = vld.sshfl [vmem:[#allocation1 + $0x8] sm:$0xff pattern:$0x73625140]
  %v169 = vld.sshfl [vmem:[#allocation1 + $0x10] sm:$0xff pattern:$0x73625140]
  %v170 = vld.sshfl [vmem:[#allocation1 + $0x18] sm:$0xff pattern:$0x73625140]
  %v171 = vld.sshfl [vmem:[#allocation1 + $0x20] sm:$0xff pattern:$0x73625140]
  %v172 = vld.sshfl [vmem:[#allocation1 + $0x28] sm:$0xff pattern:$0x73625140]
  %v173 = vld.sshfl [vmem:[#allocation1 + $0x30] sm:$0xff pattern:$0x73625140]
  %v174 = vld.sshfl [vmem:[#allocation1 + $0x38] sm:$0xff pattern:$0x73625140]
  %183 = vmatpush.msra.mxu0 %v45
  %184 = vmatpush.msra.mxu0 %v44
  %185 = vmatpush.msra.mxu0 %v43
  %186 = vmatpush.msra.mxu0 %v42
  %187 = vmatpush.msra.mxu0 %v41
  %188 = vmatpush.msra.mxu0 %v40
  %189 = vmatpush.msra.mxu0 %v39
  %190 = vmatpush.msra.mxu0 %v38
  %191 = vmatpush.msra.mxu0 %v37
  %192 = vmatpush.msra.mxu0 %v36
  %193 = vmatpush.msra.mxu0 %v35
  %194 = vmatpush.msra.mxu0 %v34
  %195 = vmatpush.msra.mxu0 %v33
  %196 = vmatpush.msra.mxu0 %v32
  %197 = vmatpush.msra.mxu0 %v31
  %198 = vmatpush.msra.mxu0 %v30
  %199 = vmatmul.f32.gmra.mxu0 %v167
  %v200 = vpop.f32.mrf.mxu0
  %v201 = vadd.f32 %v160, %v200
  %202 = vdwg.mxu0
  %203 = vmatpush.msra.mxu0 %v61
  %204 = vmatpush.msra.mxu0 %v60
  %205 = vmatpush.msra.mxu0 %v59
  %206 = vmatpush.msra.mxu0 %v58
  %207 = vmatpush.msra.mxu0 %v57
  %208 = vmatpush.msra.mxu0 %v56
  %209 = vmatpush.msra.mxu0 %v55
  %210 = vmatpush.msra.mxu0 %v54
  %211 = vmatpush.msra.mxu0 %v53
  %212 = vmatpush.msra.mxu0 %v52
  %213 = vmatpush.msra.mxu0 %v51
  %214 = vmatpush.msra.mxu0 %v50
  %215 = vmatpush.msra.mxu0 %v49
  %216 = vmatpush.msra.mxu0 %v48
  %217 = vmatpush.msra.mxu0 %v47
  %218 = vmatpush.msra.mxu0 %v46
  %219 = vmatmul.f32.gmra.mxu0 %v168
  %v220 = vpop.f32.mrf.mxu0
  %v221 = vadd.f32 %v201, %v220
  %222 = vdwg.mxu0
  %223 = vmatpush.msra.mxu0 %v77
  %224 = vmatpush.msra.mxu0 %v76
  %225 = vmatpush.msra.mxu0 %v75
  %226 = vmatpush.msra.mxu0 %v74
  %227 = vmatpush.msra.mxu0 %v73
  %228 = vmatpush.msra.mxu0 %v72
  %229 = vmatpush.msra.mxu0 %v71
  %230 = vmatpush.msra.mxu0 %v70
  %231 = vmatpush.msra.mxu0 %v69
  %232 = vmatpush.msra.mxu0 %v68
  %233 = vmatpush.msra.mxu0 %v67
  %234 = vmatpush.msra.mxu0 %v66
  %235 = vmatpush.msra.mxu0 %v65
  %236 = vmatpush.msra.mxu0 %v64
  %237 = vmatpush.msra.mxu0 %v63
  %238 = vmatpush.msra.mxu0 %v62
  %239 = vmatmul.f32.gmra.mxu0 %v169
  %v240 = vpop.f32.mrf.mxu0
  %v241 = vadd.f32 %v221, %v240
  %242 = vdwg.mxu0
  %243 = vmatpush.msra.mxu0 %v93
  %244 = vmatpush.msra.mxu0 %v92
  %245 = vmatpush.msra.mxu0 %v91
  %246 = vmatpush.msra.mxu0 %v90
  %247 = vmatpush.msra.mxu0 %v89
  %248 = vmatpush.msra.mxu0 %v88
  %249 = vmatpush.msra.mxu0 %v87
  %250 = vmatpush.msra.mxu0 %v86
  %251 = vmatpush.msra.mxu0 %v85
  %252 = vmatpush.msra.mxu0 %v84
  %253 = vmatpush.msra.mxu0 %v83
  %254 = vmatpush.msra.mxu0 %v82
  %255 = vmatpush.msra.mxu0 %v81
  %256 = vmatpush.msra.mxu0 %v80
  %257 = vmatpush.msra.mxu0 %v79
  %258 = vmatpush.msra.mxu0 %v78
  %259 = vmatmul.f32.gmra.mxu0 %v170
  %v260 = vpop.f32.mrf.mxu0
  %v261 = vadd.f32 %v241, %v260
  %262 = vdwg.mxu0
  %263 = vmatpush.msra.mxu0 %v109
  %264 = vmatpush.msra.mxu0 %v108
  %265 = vmatpush.msra.mxu0 %v107
  %266 = vmatpush.msra.mxu0 %v106
  %267 = vmatpush.msra.mxu0 %v105
  %268 = vmatpush.msra.mxu0 %v104
  %269 = vmatpush.msra.mxu0 %v103
  %270 = vmatpush.msra.mxu0 %v102
  %271 = vmatpush.msra.mxu0 %v101
  %272 = vmatpush.msra.mxu0 %v100
  %273 = vmatpush.msra.mxu0 %v99
  %274 = vmatpush.msra.mxu0 %v98
  %275 = vmatpush.msra.mxu0 %v97
  %276 = vmatpush.msra.mxu0 %v96
  %277 = vmatpush.msra.mxu0 %v95
  %278 = vmatpush.msra.mxu0 %v94
  %279 = vmatmul.f32.gmra.mxu0 %v171
  %v280 = vpop.f32.mrf.mxu0
  %v281 = vadd.f32 %v261, %v280
  %282 = vdwg.mxu0
  %283 = vmatpush.msra.mxu0 %v125
  %284 = vmatpush.msra.mxu0 %v124
  %285 = vmatpush.msra.mxu0 %v123
  %286 = vmatpush.msra.mxu0 %v122
  %287 = vmatpush.msra.mxu0 %v121
  %288 = vmatpush.msra.mxu0 %v120
  %289 = vmatpush.msra.mxu0 %v119
  %290 = vmatpush.msra.mxu0 %v118
  %291 = vmatpush.msra.mxu0 %v117
  %292 = vmatpush.msra.mxu0 %v116
  %293 = vmatpush.msra.mxu0 %v115
  %294 = vmatpush.msra.mxu0 %v114
  %295 = vmatpush.msra.mxu0 %v113
  %296 = vmatpush.msra.mxu0 %v112
  %297 = vmatpush.msra.mxu0 %v111
  %298 = vmatpush.msra.mxu0 %v110
  %299 = vmatmul.f32.gmra.mxu0 %v172
  %v300 = vpop.f32.mrf.mxu0
  %v301 = vadd.f32 %v281, %v300
  %302 = vdwg.mxu0
  %303 = vmatpush.msra.mxu0 %v141
  %304 = vmatpush.msra.mxu0 %v140
  %305 = vmatpush.msra.mxu0 %v139
  %306 = vmatpush.msra.mxu0 %v138
  %307 = vmatpush.msra.mxu0 %v137
  %308 = vmatpush.msra.mxu0 %v136
  %309 = vmatpush.msra.mxu0 %v135
  %310 = vmatpush.msra.mxu0 %v134
  %311 = vmatpush.msra.mxu0 %v133
  %312 = vmatpush.msra.mxu0 %v132
  %313 = vmatpush.msra.mxu0 %v131
  %314 = vmatpush.msra.mxu0 %v130
  %315 = vmatpush.msra.mxu0 %v129
  %316 = vmatpush.msra.mxu0 %v128
  %317 = vmatpush.msra.mxu0 %v127
  %318 = vmatpush.msra.mxu0 %v126
  %319 = vmatmul.f32.gmra.mxu0 %v173
  %v320 = vpop.f32.mrf.mxu0
  %v321 = vadd.f32 %v301, %v320
  %322 = vdwg.mxu0
  %323 = vmatpush.msra.mxu0 %v157
  %324 = vmatpush.msra.mxu0 %v156
  %325 = vmatpush.msra.mxu0 %v155
  %326 = vmatpush.msra.mxu0 %v154
  %327 = vmatpush.msra.mxu0 %v153
  %328 = vmatpush.msra.mxu0 %v152
  %329 = vmatpush.msra.mxu0 %v151
  %330 = vmatpush.msra.mxu0 %v150
  %331 = vmatpush.msra.mxu0 %v149
  %332 = vmatpush.msra.mxu0 %v148
  %333 = vmatpush.msra.mxu0 %v147
  %334 = vmatpush.msra.mxu0 %v146
  %335 = vmatpush.msra.mxu0 %v145
  %336 = vmatpush.msra.mxu0 %v144
  %337 = vmatpush.msra.mxu0 %v143
  %338 = vmatpush.msra.mxu0 %v142
  %339 = vmatmul.f32.gmra.mxu0 %v174
  %v340 = vpop.f32.mrf.mxu0
  %v341 = vadd.f32 %v321, %v340
  %342 = vdwg.mxu0
  %vm343 = vcmp.ge.f32.partialorder %v341, 0.0
  %v344 = vmul.f32 %v341, 0.2
  %v345 = vsel %vm343, %v341, %v344
  %v346 = vld [vmem:[%s3] sm:$0xff]
  %v347 = vld [vmem:[%s3 + $0x8] sm:$0xff]
  %v348 = vld [vmem:[%s3 + $0x10] sm:$0xff]
  %v349 = vld [vmem:[%s3 + $0x18] sm:$0xff]
  %v350 = vld [vmem:[%s3 + $0x20] sm:$0xff]
  %v351 = vld [vmem:[%s3 + $0x28] sm:$0xff]
  %v352 = vld [vmem:[%s3 + $0x30] sm:$0xff]
  %v353 = vld [vmem:[%s3 + $0x38] sm:$0xff]
  %v354 = vld [vmem:[%s3 + $0x40] sm:$0xff]
  %v355 = vld [vmem:[%s3 + $0x48] sm:$0xff]
  %v356 = vld [vmem:[%s3 + $0x50] sm:$0xff]
  %v357 = vld [vmem:[%s3 + $0x58] sm:$0xff]
  %v358 = vld [vmem:[%s3 + $0x60] sm:$0xff]
  %v359 = vld [vmem:[%s3 + $0x68] sm:$0xff]
  %v360 = vld [vmem:[%s3 + $0x70] sm:$0xff]
  %v361 = vld [vmem:[%s3 + $0x78] sm:$0xff]
  %v362 = vld [vmem:[%s4] sm:$0x1]
  %v364 = vperm.slane %v362, 0
  %366 = vmatpush.msra.mxu0 %v361
  %367 = vmatpush.msra.mxu0 %v360
  %368 = vmatpush.msra.mxu0 %v359
  %369 = vmatpush.msra.mxu0 %v358
  %370 = vmatpush.msra.mxu0 %v357
  %371 = vmatpush.msra.mxu0 %v356
  %372 = vmatpush.msra.mxu0 %v355
  %373 = vmatpush.msra.mxu0 %v354
  %374 = vmatpush.msra.mxu0 %v353
  %375 = vmatpush.msra.mxu0 %v352
  %376 = vmatpush.msra.mxu0 %v351
  %377 = vmatpush.msra.mxu0 %v350
  %378 = vmatpush.msra.mxu0 %v349
  %379 = vmatpush.msra.mxu0 %v348
  %380 = vmatpush.msra.mxu0 %v347
  %381 = vmatpush.msra.mxu0 %v346
  %382 = vmatmul.f32.gmra.mxu0 %v345
  %v383 = vpop.f32.mrf.mxu0
  %v384 = vadd.f32 %v364, %v383
  %385 = vdwg.mxu0
  %v386 = vld [vmem:[%s5] sm:$0x3]
  %v387 = vmul.f32 %v384, %v386
  %vm388 = vcmask 517120
  %v389 = vsel %vm388, %v387, 0.0
  %390 = vadd.xlane.f32.xlu0 %v389
  %v391 = vpop.xlane.xlu0 %390
  %v392 = vld [vmem:[#allocation2] sm:$0x1]
  %v394 = vperm.slane %v392, 0
  %v396 = vadd.f32 %v391, %v394
  %vm397 = vcmask 1024
  %398 = vst.msk [vmem:[%s7] sm:$0x3] %vm397, %v396
  // Predicated region
  $region30: #{_lambda_.7} parent=0 // pred_check
    _
  $region31: #{_lambda_.7} parent=0 // pred_check_branch
    %400 = sbr.rel (0) target = $region33
  $region32: #{_lambda_.7} parent=0 // pred_region
    _
  $region33: #{_lambda_.7} parent=0 // pred_fallthru
    _
  // Predicated region
  $region34: #{_lambda_.7} parent=0 // pred_check
    _
  $region35: #{_lambda_.7} parent=0 // pred_check_branch
    %402 = sbr.rel (0) target = $region37
  $region36: #{_lambda_.7} parent=0 // pred_region
    _
  $region37: #{_lambda_.7} parent=0 // pred_fallthru
    _

</llo_original>
